<compile_context>
chip_gen: v7x
topology: tpu7x:2x2x1
jax: 0.10.0
libtpu: 0.0.40
codegen_flags: <defaults>
</compile_context>

<pallas_src>
import functools
import math

import jax
import jax.numpy as jnp
from jax.experimental import pallas as pl
from jax.experimental.pallas import tpu as pltpu


_COMPUTE_DTYPE = jnp.bfloat16      # MXU operand dtype
_LN_EPS = 1e-5
_ROW_TILE_TARGET = 512             # activation row-tile target (feedback: 512 on v5e/v6e)


def _pick_vmem_limit():
    """~3/4 of physical VMEM: 48 MiB on v7x (64 MiB), 96 MiB on v5e/v6e (128 MiB)."""
    try:
        info = pltpu.get_tpu_info()
        cap = getattr(info, "vmem_capacity_bytes", None)
        if cap:
            return int(min(cap * 3 // 4, 100 * 1024 * 1024))
    except Exception:
        pass
    return 48 * 1024 * 1024


_VMEM_LIMIT = _pick_vmem_limit()


def _cparams(grid_rank):
    return pltpu.CompilerParams(
        dimension_semantics=("parallel",) * grid_rank,
        vmem_limit_bytes=_VMEM_LIMIT,
    )


def _const_spec(shape):
    # Constant-index operand (weights / biases / LN params): fetched once, single-buffered.
    return pl.BlockSpec(shape, lambda i: (0,) * len(shape),
                        pipeline_mode=pl.Buffered(1))


def _row_tile(m, row_align, target=_ROW_TILE_TARGET):
    """m is a multiple of row_align (batch * padded-seq); pick the largest multiple of
    row_align <= target that divides m, so the grid is multi-step and mask-free."""
    if m <= target:
        return m
    best = row_align
    for k in range(target // row_align, 1, -1):
        t = row_align * k
        if m % t == 0:
            best = t
            break
    return best


def _layer_norm_f32(x, g, b, eps):
    mu = jnp.mean(x, axis=-1, keepdims=True)
    var = jnp.mean(jnp.square(x - mu), axis=-1, keepdims=True)
    return (x - mu) * jax.lax.rsqrt(var + eps) * g + b


# ----------------------------- Pallas kernels ------------------------------


def _ln_qkv_kernel(x_ref, g_ref, b_ref, w_ref, bias_ref, o_ref, *, eps):
    # Fused LayerNorm1 (f32) + fused-QKV projection (bf16 operands, f32 accumulation).
    x = x_ref[...].astype(jnp.float32)
    xn = _layer_norm_f32(x, g_ref[...], b_ref[...], eps)
    y = jnp.dot(xn.astype(w_ref.dtype), w_ref[...], preferred_element_type=jnp.float32)
    o_ref[...] = (y + bias_ref[...]).astype(o_ref.dtype)


def _attn_kernel(qkv_ref, o_ref, *, num_heads, head_dim, seq_len):
    # One batch element per grid step. Reads the (S, 3D) QKV slab directly (no XLA
    # transposes) and writes a lane-dense (S, D) output slab. q is pre-scaled
    # (head_dim**-0.5 folded into the q weights/bias). Causal mask as in CLIP text model.
    d_model = num_heads * head_dim
    qkv = qkv_ref[...]                                        # (S, 3D) bf16
    rows = jax.lax.broadcasted_iota(jnp.int32, (seq_len, seq_len), 0)
    cols = jax.lax.broadcasted_iota(jnp.int32, (seq_len, seq_len), 1)
    causal = cols <= rows
    outs = []
    for h in range(num_heads):                                # static unroll over heads
        lo = h * head_dim
        hi = lo + head_dim
        qh = qkv[:, lo:hi]
        kh = qkv[:, d_model + lo:d_model + hi]
        vh = qkv[:, 2 * d_model + lo:2 * d_model + hi]
        # q @ k^T via dot_general (contract last dims) — no explicit transpose.
        s = jax.lax.dot_general(qh, kh, (((1,), (1,)), ((), ())),
                                preferred_element_type=jnp.float32)
        s = jnp.where(causal, s, -1e30)
        m = jnp.max(s, axis=-1, keepdims=True)
        p = jnp.exp(s - m)
        p = p * pl.reciprocal(jnp.sum(p, axis=-1, keepdims=True), approx=True)
        outs.append(jnp.dot(p.astype(vh.dtype), vh, preferred_element_type=jnp.float32))
    o_ref[...] = jnp.concatenate(outs, axis=-1).astype(o_ref.dtype)


def _attn_out_mlp_kernel(attn_ref, res_ref, ow_ref, ob_ref, g_ref, b_ref,
                         w1_ref, b1_ref, w2_ref, b2_ref, o_ref, *, eps):
    # Fused: out-projection + bias + residual + LN2 + fc1 + quick_gelu + fc2 + residual.
    a = attn_ref[...]                                                         # bf16
    y = jnp.dot(a, ow_ref[...], preferred_element_type=jnp.float32) + ob_ref[...]
    x = res_ref[...].astype(jnp.float32) + y                                  # residual 1 (f32)
    xn = _layer_norm_f32(x, g_ref[...], b_ref[...], eps)
    h1 = jnp.dot(xn.astype(w1_ref.dtype), w1_ref[...],
                 preferred_element_type=jnp.float32) + b1_ref[...]
    h1 = h1 * jax.nn.sigmoid(1.702 * h1)                                      # quick_gelu (EUP)
    h2 = jnp.dot(h1.astype(w2_ref.dtype), w2_ref[...],
                 preferred_element_type=jnp.float32) + b2_ref[...]
    o_ref[...] = (x + h2).astype(o_ref.dtype)                                 # residual 2


def _layernorm_kernel(x_ref, g_ref, b_ref, o_ref, *, eps):
    x = x_ref[...].astype(jnp.float32)
    o_ref[...] = _layer_norm_f32(x, g_ref[...], b_ref[...], eps).astype(o_ref.dtype)


def _linear_kernel(x_ref, w_ref, b_ref, o_ref):
    y = jnp.dot(x_ref[...], w_ref[...], preferred_element_type=jnp.float32)
    o_ref[...] = (y + b_ref[...]).astype(o_ref.dtype)


# ------------------------------ kernel wrappers ------------------------------


def ln_qkv(x, g, b, w, bias, *, row_align, eps=_LN_EPS):
    """Fused LN1(x) @ qkv_w + qkv_b -> (M, 3D) bf16, tiled over rows, parallel grid."""
    M, K = x.shape
    N = w.shape[1]
    tm = _row_tile(M, row_align)
    ce = pl.CostEstimate(
        flops=2 * M * K * N,
        transcendentals=M,
        bytes_accessed=M * K * 4 + K * N * 2 + M * N * 2 + (2 * K + N) * 4)
    return pl.pallas_call(
        functools.partial(_ln_qkv_kernel, eps=eps),
        out_shape=jax.ShapeDtypeStruct((M, N), _COMPUTE_DTYPE),
        grid=(M // tm,),
        in_specs=[
            pl.BlockSpec((tm, K), lambda i: (i, 0)),
            _const_spec((1, K)),
            _const_spec((1, K)),
            _const_spec((K, N)),
            _const_spec((1, N)),
        ],
        out_specs=pl.BlockSpec((tm, N), lambda i: (i, 0)),
        compiler_params=_cparams(1),
        cost_estimate=ce,
    )(x, g, b, w, bias)


def attention(qkv, *, batch, seq, num_heads, head_dim):
    """qkv: (batch*seq, 3D) bf16 -> attention output (batch*seq, D) bf16 (lane-dense)."""
    d_model = num_heads * head_dim
    kern = functools.partial(_attn_kernel, num_heads=num_heads,
                             head_dim=head_dim, seq_len=seq)
    return pl.pallas_call(
        kern,
        out_shape=jax.ShapeDtypeStruct((batch * seq, d_model), _COMPUTE_DTYPE),
        grid=(batch,),
        in_specs=[pl.BlockSpec((seq, 3 * d_model), lambda bidx: (bidx, 0))],
        out_specs=pl.BlockSpec((seq, d_model), lambda bidx: (bidx, 0)),
        compiler_params=_cparams(1),
    )(qkv)


def attn_out_mlp(attn, res, ow, ob, g, b, w1, b1, w2, b2, *, row_align, eps=_LN_EPS):
    """Fused out-proj + residual + LN2 + MLP(quick_gelu) + residual; residual stream in f32."""
    M, D = res.shape
    H = w1.shape[1]
    tm = _row_tile(M, row_align)
    ce = pl.CostEstimate(
        flops=2 * M * D * D + 4 * M * D * H,
        transcendentals=M * H + M,
        bytes_accessed=M * D * 2 + 2 * M * D * 4 + (D * D + 2 * D * H) * 2 + (4 * D + H) * 4)
    return pl.pallas_call(
        functools.partial(_attn_out_mlp_kernel, eps=eps),
        out_shape=jax.ShapeDtypeStruct((M, D), jnp.float32),
        grid=(M // tm,),
        in_specs=[
            pl.BlockSpec((tm, D), lambda i: (i, 0)),     # attn output
            pl.BlockSpec((tm, D), lambda i: (i, 0)),     # residual stream
            _const_spec((D, D)), _const_spec((1, D)),    # o_w, o_b
            _const_spec((1, D)), _const_spec((1, D)),    # ln2 g, b
            _const_spec((D, H)), _const_spec((1, H)),    # fc1
            _const_spec((H, D)), _const_spec((1, D)),    # fc2
        ],
        out_specs=pl.BlockSpec((tm, D), lambda i: (i, 0)),
        compiler_params=_cparams(1),
        cost_estimate=ce,
    )(attn, res, ow, ob, g, b, w1, b1, w2, b2)


def layernorm(x, g, b, *, row_align, eps=_LN_EPS):
    M, D = x.shape
    tm = _row_tile(M, row_align)
    return pl.pallas_call(
        functools.partial(_layernorm_kernel, eps=eps),
        out_shape=jax.ShapeDtypeStruct((M, D), jnp.float32),
        grid=(M // tm,),
        in_specs=[pl.BlockSpec((tm, D), lambda i: (i, 0)),
                  _const_spec((1, D)), _const_spec((1, D))],
        out_specs=pl.BlockSpec((tm, D), lambda i: (i, 0)),
        compiler_params=_cparams(1),
    )(x, g, b)


def linear(x, w, b, out_dtype=jnp.float32):
    """Small helper used for the final text projection (x: (B, D), tiny)."""
    M, K = x.shape
    N = w.shape[1]
    return pl.pallas_call(
        _linear_kernel,
        out_shape=jax.ShapeDtypeStruct((M, N), out_dtype),
        grid=(1,),
        in_specs=[pl.BlockSpec((M, K), lambda i: (0, 0)),
                  _const_spec((K, N)), _const_spec((1, N))],
        out_specs=pl.BlockSpec((M, N), lambda i: (0, 0)),
        compiler_params=_cparams(1),
    )(x, w, b)


# --------------------------- parameter construction ------------------------


def init_params(key, cfg):
    V, D, H = cfg["vocab_size"], cfg["hidden"], cfg["mlp_dim"]
    L, nh, P = cfg["num_layers"], cfg["num_heads"], cfg["proj_dim"]
    maxpos = cfg["max_position"]
    scale = (D // nh) ** -0.5

    keys = iter(jax.random.split(key, 8 + 6 * L))
    nrm = lambda shape, s=0.02: s * jax.random.normal(next(keys), shape, dtype=jnp.float32)
    bf = lambda a: a.astype(_COMPUTE_DTYPE)

    params = {
        "token_emb": nrm((V, D)),
        "pos_emb": nrm((maxpos, D)),
        "final_ln_g": jnp.ones((1, D), jnp.float32),
        "final_ln_b": jnp.zeros((1, D), jnp.float32),
        "text_proj_w": bf(nrm((D, P))),                     # text_projection (bias=False)
    }

    layers = []
    for _ in range(L):
        qw, kw, vw = nrm((D, D)), nrm((D, D)), nrm((D, D))
        layers.append({
            "ln1_g": jnp.ones((1, D), jnp.float32), "ln1_b": jnp.zeros((1, D), jnp.float32),
            # fused QKV projection; CLIP attention scale folded into the q slice
            "qkv_w": bf(jnp.concatenate([qw * scale, kw, vw], axis=1)),
            "qkv_b": jnp.zeros((1, 3 * D), jnp.float32),
            "o_w": bf(nrm((D, D))), "o_b": jnp.zeros((1, D), jnp.float32),
            "ln2_g": jnp.ones((1, D), jnp.float32), "ln2_b": jnp.zeros((1, D), jnp.float32),
            "fc1_w": bf(nrm((D, H))), "fc1_b": jnp.zeros((1, H), jnp.float32),
            "fc2_w": bf(nrm((H, D))), "fc2_b": jnp.zeros((1, D), jnp.float32),
        })
    params["layers"] = layers
    return params


# ------------------------------ forward pass --------------------------------


def clip_text_forward(params, input_ids, cfg):
    """input_ids: (B, S) int32 tokenized prompts -> text features (B, proj_dim)."""
    B, S = input_ids.shape
    D = cfg["hidden"]
    nh = cfg["num_heads"]
    dh = D // nh

    # Pad the sequence so row tiles and attention blocks are (8,128)-aligned; the causal
    # mask keeps valid queries from attending to trailing pad keys, and pad rows are dropped.
    seq_align = 128 if S > 64 else 8
    S_pad = int(math.ceil(S / seq_align) * seq_align)

    # --- CLIPTextEmbeddings (gathers kept in plain JAX: tiny, data-dependent) ---
    h = jnp.take(params["token_emb"], input_ids, axis=0) + params["pos_emb"][None, :S, :]
    if S_pad > S:
        h = jnp.pad(h, ((0, 0), (0, S_pad - S), (0, 0)))
    M = B * S_pad
    hs = h.reshape(M, D).astype(jnp.float32)                  # residual stream in f32

    # --- CLIPEncoder layers ---
    for lp in params["layers"]:
        qkv = ln_qkv(hs, lp["ln1_g"], lp["ln1_b"], lp["qkv_w"], lp["qkv_b"],
                     row_align=S_pad)                                        # (M, 3D) bf16
        attn = attention(qkv, batch=B, seq=S_pad, num_heads=nh, head_dim=dh)  # (M, D) bf16
        hs = attn_out_mlp(attn, hs, lp["o_w"], lp["o_b"], lp["ln2_g"], lp["ln2_b"],
                          lp["fc1_w"], lp["fc1_b"], lp["fc2_w"], lp["fc2_b"],
                          row_align=S_pad)                                    # (M, D) f32

    # --- final_layer_norm ---
    hs = layernorm(hs, params["final_ln_g"], params["final_ln_b"], row_align=S_pad)
    last_hidden = hs.reshape(B, S_pad, D)[:, :S, :]

    # --- pooled output = hidden state at the eot token (argmax of input ids, CLIP convention) ---
    eot = jnp.argmax(input_ids, axis=-1)
    pooled = last_hidden[jnp.arange(B), eot]                  # (B, D)

    # --- text_projection (Linear, bias=False) ---
    zero_bias = jnp.zeros((1, params["text_proj_w"].shape[1]), jnp.float32)
    text_features = linear(pooled.astype(_COMPUTE_DTYPE), params["text_proj_w"], zero_bias)
    return text_features


# ----------------------------------- main -----------------------------------

if __name__ == "__main__":
    # TODO(synk): the HF tokenizer / CUSTOM_TEMPLATES prompt-string formatting of the original
    # TextEncoder has no Pallas equivalent; the kernel consumes pre-tokenized int32 input_ids.
    cfg = {
        "vocab_size": 64,
        "max_position": 16,
        "hidden": 32,
        "mlp_dim": 128,
        "num_heads": 4,
        "num_layers": 2,
        "proj_dim": 16,
        "seq_len": 8,
    }

    key = jax.random.PRNGKey(0)
    pkey, tkey = jax.random.split(key)
    params = init_params(pkey, cfg)

    B, S = 2, cfg["seq_len"]
    input_ids = jax.random.randint(tkey, (B, S), 1, cfg["vocab_size"] - 1, dtype=jnp.int32)
    # mimic CLIP tokenization: the end-of-text token has the highest id -> argmax pooling finds it
    input_ids = input_ids.at[:, -1].set(cfg["vocab_size"] - 1)

    fwd = jax.jit(functools.partial(clip_text_forward, cfg=cfg))
    text_features = fwd(params, input_ids)
    jax.block_until_ready(text_features)

    assert text_features.shape == (B, cfg["proj_dim"])
    print("KERNEL_OK")
</pallas_src>

<mosaic_0001>
module attributes {stable_mosaic.version = 11 : i64} {
  func.func @_ln_qkv_kernel(%arg0: i32, %arg1: memref<16x32xf32, #tpu.memory_space<vmem>>, %arg2: memref<1x32xf32, #tpu.memory_space<vmem>>, %arg3: memref<1x32xf32, #tpu.memory_space<vmem>>, %arg4: memref<32x96xbf16, #tpu.memory_space<vmem>>, %arg5: memref<1x96xf32, #tpu.memory_space<vmem>>, %arg6: memref<16x96xbf16, #tpu.memory_space<vmem>>) attributes {dimension_semantics = [#tpu.dimension_semantics<parallel>], iteration_bounds = array<i64: 1>, scalar_prefetch = 0 : i64, scratch_operands = 0 : i64, tpu.core_type = #tpu.core_type<tc>, window_params = [{transform_indices = @transform_0, window_bounds = array<i64: 16, 32>}, {pipeline_mode = #tpu.pipeline_mode<synchronous>, transform_indices = @transform_1, window_bounds = array<i64: 1, 32>}, {pipeline_mode = #tpu.pipeline_mode<synchronous>, transform_indices = @transform_2, window_bounds = array<i64: 1, 32>}, {pipeline_mode = #tpu.pipeline_mode<synchronous>, transform_indices = @transform_3, window_bounds = array<i64: 32, 96>}, {pipeline_mode = #tpu.pipeline_mode<synchronous>, transform_indices = @transform_4, window_bounds = array<i64: 1, 96>}, {transform_indices = @transform_5, window_bounds = array<i64: 16, 96>}]} {
    %c0 = arith.constant 0 : index
    %c0_0 = arith.constant 0 : index
    %0 = vector.load %arg1[%c0, %c0_0] : memref<16x32xf32, #tpu.memory_space<vmem>>, vector<16x32xf32>
    %c0_1 = arith.constant 0 : index
    %c0_2 = arith.constant 0 : index
    %1 = vector.load %arg2[%c0_1, %c0_2] : memref<1x32xf32, #tpu.memory_space<vmem>>, vector<1x32xf32>
    %c0_3 = arith.constant 0 : index
    %c0_4 = arith.constant 0 : index
    %2 = vector.load %arg3[%c0_3, %c0_4] : memref<1x32xf32, #tpu.memory_space<vmem>>, vector<1x32xf32>
    %cst = arith.constant dense<0.000000e+00> : vector<16xf32>
    %3 = vector.multi_reduction <add>, %0, %cst [1] : vector<16x32xf32> to vector<16xf32>
    %4 = vector.shape_cast %3 : vector<16xf32> to vector<16x1xf32>
    %cst_5 = arith.constant 3.200000e+01 : f32
    %5 = vector.broadcast %cst_5 : f32 to vector<16x1xf32>
    %6 = arith.divf %4, %5 : vector<16x1xf32>
    %7 = vector.broadcast %6 : vector<16x1xf32> to vector<16x32xf32>
    %8 = arith.subf %0, %7 : vector<16x32xf32>
    %9 = arith.mulf %8, %8 : vector<16x32xf32>
    %cst_6 = arith.constant dense<0.000000e+00> : vector<16xf32>
    %10 = vector.multi_reduction <add>, %9, %cst_6 [1] : vector<16x32xf32> to vector<16xf32>
    %11 = vector.shape_cast %10 : vector<16xf32> to vector<16x1xf32>
    %cst_7 = arith.constant 3.200000e+01 : f32
    %12 = vector.broadcast %cst_7 : f32 to vector<16x1xf32>
    %13 = arith.divf %11, %12 : vector<16x1xf32>
    %14 = vector.broadcast %6 : vector<16x1xf32> to vector<16x32xf32>
    %15 = arith.subf %0, %14 : vector<16x32xf32>
    %cst_8 = arith.constant 9.99999974E-6 : f32
    %16 = vector.broadcast %cst_8 : f32 to vector<16x1xf32>
    %17 = arith.addf %13, %16 : vector<16x1xf32>
    %18 = math.rsqrt %17 : vector<16x1xf32>
    %19 = vector.broadcast %18 : vector<16x1xf32> to vector<16x32xf32>
    %20 = arith.mulf %15, %19 : vector<16x32xf32>
    %21 = vector.broadcast %1 : vector<1x32xf32> to vector<16x32xf32>
    %22 = arith.mulf %20, %21 : vector<16x32xf32>
    %23 = vector.broadcast %2 : vector<1x32xf32> to vector<16x32xf32>
    %24 = arith.addf %22, %23 : vector<16x32xf32>
    %25 = arith.truncf %24 : vector<16x32xf32> to vector<16x32xbf16>
    %c0_9 = arith.constant 0 : index
    %c0_10 = arith.constant 0 : index
    %26 = vector.load %arg4[%c0_9, %c0_10] : memref<32x96xbf16, #tpu.memory_space<vmem>>, vector<32x96xbf16>
    %cst_11 = arith.constant dense<0.000000e+00> : vector<16x96xf32>
    %27 = tpu.matmul %25, %26, %cst_11 {dimension_numbers = #tpu.dot_dimension_numbers<[1], [0], [0], [1], [0, 0, 1, 1], [], []>} : vector<16x32xbf16>, vector<32x96xbf16>, vector<16x96xf32> -> vector<16x96xf32>
    %c0_12 = arith.constant 0 : index
    %c0_13 = arith.constant 0 : index
    %28 = vector.load %arg5[%c0_12, %c0_13] : memref<1x96xf32, #tpu.memory_space<vmem>>, vector<1x96xf32>
    %29 = vector.broadcast %28 : vector<1x96xf32> to vector<16x96xf32>
    %30 = arith.addf %27, %29 : vector<16x96xf32>
    %31 = arith.truncf %30 : vector<16x96xf32> to vector<16x96xbf16>
    %c0_14 = arith.constant 0 : index
    %c0_15 = arith.constant 0 : index
    %32 = vector.load %arg6[%c0_14, %c0_15] : memref<16x96xbf16, #tpu.memory_space<vmem>>, vector<16x96xbf16>
    tpu.vector_store %arg6[%c0_14, %c0_15], %31 {strides = array<i32>} : memref<16x96xbf16, #tpu.memory_space<vmem>>, vector<16x96xbf16>,
    return
  }
  func.func @transform_0(%arg0: i32) -> (i32, i32) {
    %c0_i32 = arith.constant 0 : i32
    %c0_i32_0 = arith.constant 0 : i32
    return %arg0, %c0_i32 : i32, i32
  }
  func.func @transform_1(%arg0: i32) -> (i32, i32) {
    %c0_i32 = arith.constant 0 : i32
    %c0_i32_0 = arith.constant 0 : i32
    %c0_i32_1 = arith.constant 0 : i32
    return %c0_i32, %c0_i32_0 : i32, i32
  }
  func.func @transform_2(%arg0: i32) -> (i32, i32) {
    %c0_i32 = arith.constant 0 : i32
    %c0_i32_0 = arith.constant 0 : i32
    %c0_i32_1 = arith.constant 0 : i32
    return %c0_i32, %c0_i32_0 : i32, i32
  }
  func.func @transform_3(%arg0: i32) -> (i32, i32) {
    %c0_i32 = arith.constant 0 : i32
    %c0_i32_0 = arith.constant 0 : i32
    %c0_i32_1 = arith.constant 0 : i32
    return %c0_i32, %c0_i32_0 : i32, i32
  }
  func.func @transform_4(%arg0: i32) -> (i32, i32) {
    %c0_i32 = arith.constant 0 : i32
    %c0_i32_0 = arith.constant 0 : i32
    %c0_i32_1 = arith.constant 0 : i32
    return %c0_i32, %c0_i32_0 : i32, i32
  }
  func.func @transform_5(%arg0: i32) -> (i32, i32) {
    %c0_i32 = arith.constant 0 : i32
    %c0_i32_0 = arith.constant 0 : i32
    return %arg0, %c0_i32 : i32, i32
  }
}

module attributes {stable_mosaic.version = 11 : i64} {
  func.func @_attn_kernel(%arg0: i32, %arg1: memref<8x96xbf16, #tpu.memory_space<vmem>>, %arg2: memref<8x32xbf16, #tpu.memory_space<vmem>>) attributes {dimension_semantics = [#tpu.dimension_semantics<parallel>], iteration_bounds = array<i64: 2>, scalar_prefetch = 0 : i64, scratch_operands = 0 : i64, tpu.core_type = #tpu.core_type<tc>, window_params = [{transform_indices = @transform_0, window_bounds = array<i64: 8, 96>}, {transform_indices = @transform_1, window_bounds = array<i64: 8, 32>}]} {
    %c0 = arith.constant 0 : index
    %c0_0 = arith.constant 0 : index
    %0 = vector.load %arg1[%c0, %c0_0] : memref<8x96xbf16, #tpu.memory_space<vmem>>, vector<8x96xbf16>
    %1 = tpu.iota {dimensions = array<i32: 0>} : vector<8x8xi32>
    %2 = tpu.iota {dimensions = array<i32: 1>} : vector<8x8xi32>
    %3 = arith.cmpi sle, %2, %1 : vector<8x8xi32>
    %4 = vector.extract_strided_slice %0 {offsets = [0, 0], sizes = [8, 8], strides = [1, 1]} : vector<8x96xbf16> to vector<8x8xbf16>
    %5 = vector.extract_strided_slice %0 {offsets = [0, 32], sizes = [8, 8], strides = [1, 1]} : vector<8x96xbf16> to vector<8x8xbf16>
    %6 = vector.extract_strided_slice %0 {offsets = [0, 64], sizes = [8, 8], strides = [1, 1]} : vector<8x96xbf16> to vector<8x8xbf16>
    %cst = arith.constant dense<0.000000e+00> : vector<8x8xf32>
    %7 = tpu.matmul %4, %5, %cst {dimension_numbers = #tpu.dot_dimension_numbers<[1], [1], [0], [0], [0, 0, 1, 0], [], []>} : vector<8x8xbf16>, vector<8x8xbf16>, vector<8x8xf32> -> vector<8x8xf32>
    %cst_1 = arith.constant -1.000000e+30 : f32
    %8 = vector.broadcast %cst_1 : f32 to vector<8x8xf32>
    %9 = arith.select %3, %7, %8 : vector<8x8xi1>, vector<8x8xf32>
    %cst_2 = arith.constant dense<0xFF800000> : vector<8xf32>
    %10 = vector.multi_reduction <maximumf>, %9, %cst_2 [1] : vector<8x8xf32> to vector<8xf32>
    %11 = vector.shape_cast %10 : vector<8xf32> to vector<8x1xf32>
    %12 = vector.broadcast %11 : vector<8x1xf32> to vector<8x8xf32>
    %13 = arith.subf %9, %12 : vector<8x8xf32>
    %14 = math.exp %13 : vector<8x8xf32>
    %cst_3 = arith.constant dense<0.000000e+00> : vector<8xf32>
    %15 = vector.multi_reduction <add>, %14, %cst_3 [1] : vector<8x8xf32> to vector<8xf32>
    %16 = vector.shape_cast %15 : vector<8xf32> to vector<8x1xf32>
    %17 = tpu.reciprocal %16 {approx = true} : vector<8x1xf32> -> vector<8x1xf32>
    %18 = vector.broadcast %17 : vector<8x1xf32> to vector<8x8xf32>
    %19 = arith.mulf %14, %18 : vector<8x8xf32>
    %20 = arith.truncf %19 : vector<8x8xf32> to vector<8x8xbf16>
    %cst_4 = arith.constant dense<0.000000e+00> : vector<8x8xf32>
    %21 = tpu.matmul %20, %6, %cst_4 {dimension_numbers = #tpu.dot_dimension_numbers<[1], [0], [0], [1], [0, 0, 1, 1], [], []>} : vector<8x8xbf16>, vector<8x8xbf16>, vector<8x8xf32> -> vector<8x8xf32>
    %22 = vector.extract_strided_slice %0 {offsets = [0, 8], sizes = [8, 8], strides = [1, 1]} : vector<8x96xbf16> to vector<8x8xbf16>
    %23 = vector.extract_strided_slice %0 {offsets = [0, 40], sizes = [8, 8], strides = [1, 1]} : vector<8x96xbf16> to vector<8x8xbf16>
    %24 = vector.extract_strided_slice %0 {offsets = [0, 72], sizes = [8, 8], strides = [1, 1]} : vector<8x96xbf16> to vector<8x8xbf16>
    %cst_5 = arith.constant dense<0.000000e+00> : vector<8x8xf32>
    %25 = tpu.matmul %22, %23, %cst_5 {dimension_numbers = #tpu.dot_dimension_numbers<[1], [1], [0], [0], [0, 0, 1, 0], [], []>} : vector<8x8xbf16>, vector<8x8xbf16>, vector<8x8xf32> -> vector<8x8xf32>
    %cst_6 = arith.constant -1.000000e+30 : f32
    %26 = vector.broadcast %cst_6 : f32 to vector<8x8xf32>
    %27 = arith.select %3, %25, %26 : vector<8x8xi1>, vector<8x8xf32>
    %cst_7 = arith.constant dense<0xFF800000> : vector<8xf32>
    %28 = vector.multi_reduction <maximumf>, %27, %cst_7 [1] : vector<8x8xf32> to vector<8xf32>
    %29 = vector.shape_cast %28 : vector<8xf32> to vector<8x1xf32>
    %30 = vector.broadcast %29 : vector<8x1xf32> to vector<8x8xf32>
    %31 = arith.subf %27, %30 : vector<8x8xf32>
    %32 = math.exp %31 : vector<8x8xf32>
    %cst_8 = arith.constant dense<0.000000e+00> : vector<8xf32>
    %33 = vector.multi_reduction <add>, %32, %cst_8 [1] : vector<8x8xf32> to vector<8xf32>
    %34 = vector.shape_cast %33 : vector<8xf32> to vector<8x1xf32>
    %35 = tpu.reciprocal %34 {approx = true} : vector<8x1xf32> -> vector<8x1xf32>
    %36 = vector.broadcast %35 : vector<8x1xf32> to vector<8x8xf32>
    %37 = arith.mulf %32, %36 : vector<8x8xf32>
    %38 = arith.truncf %37 : vector<8x8xf32> to vector<8x8xbf16>
    %cst_9 = arith.constant dense<0.000000e+00> : vector<8x8xf32>
    %39 = tpu.matmul %38, %24, %cst_9 {dimension_numbers = #tpu.dot_dimension_numbers<[1], [0], [0], [1], [0, 0, 1, 1], [], []>} : vector<8x8xbf16>, vector<8x8xbf16>, vector<8x8xf32> -> vector<8x8xf32>
    %40 = vector.extract_strided_slice %0 {offsets = [0, 16], sizes = [8, 8], strides = [1, 1]} : vector<8x96xbf16> to vector<8x8xbf16>
    %41 = vector.extract_strided_slice %0 {offsets = [0, 48], sizes = [8, 8], strides = [1, 1]} : vector<8x96xbf16> to vector<8x8xbf16>
    %42 = vector.extract_strided_slice %0 {offsets = [0, 80], sizes = [8, 8], strides = [1, 1]} : vector<8x96xbf16> to vector<8x8xbf16>
    %cst_10 = arith.constant dense<0.000000e+00> : vector<8x8xf32>
    %43 = tpu.matmul %40, %41, %cst_10 {dimension_numbers = #tpu.dot_dimension_numbers<[1], [1], [0], [0], [0, 0, 1, 0], [], []>} : vector<8x8xbf16>, vector<8x8xbf16>, vector<8x8xf32> -> vector<8x8xf32>
    %cst_11 = arith.constant -1.000000e+30 : f32
    %44 = vector.broadcast %cst_11 : f32 to vector<8x8xf32>
    %45 = arith.select %3, %43, %44 : vector<8x8xi1>, vector<8x8xf32>
    %cst_12 = arith.constant dense<0xFF800000> : vector<8xf32>
    %46 = vector.multi_reduction <maximumf>, %45, %cst_12 [1] : vector<8x8xf32> to vector<8xf32>
    %47 = vector.shape_cast %46 : vector<8xf32> to vector<8x1xf32>
    %48 = vector.broadcast %47 : vector<8x1xf32> to vector<8x8xf32>
    %49 = arith.subf %45, %48 : vector<8x8xf32>
    %50 = math.exp %49 : vector<8x8xf32>
    %cst_13 = arith.constant dense<0.000000e+00> : vector<8xf32>
    %51 = vector.multi_reduction <add>, %50, %cst_13 [1] : vector<8x8xf32> to vector<8xf32>
    %52 = vector.shape_cast %51 : vector<8xf32> to vector<8x1xf32>
    %53 = tpu.reciprocal %52 {approx = true} : vector<8x1xf32> -> vector<8x1xf32>
    %54 = vector.broadcast %53 : vector<8x1xf32> to vector<8x8xf32>
    %55 = arith.mulf %50, %54 : vector<8x8xf32>
    %56 = arith.truncf %55 : vector<8x8xf32> to vector<8x8xbf16>
    %cst_14 = arith.constant dense<0.000000e+00> : vector<8x8xf32>
    %57 = tpu.matmul %56, %42, %cst_14 {dimension_numbers = #tpu.dot_dimension_numbers<[1], [0], [0], [1], [0, 0, 1, 1], [], []>} : vector<8x8xbf16>, vector<8x8xbf16>, vector<8x8xf32> -> vector<8x8xf32>
    %58 = vector.extract_strided_slice %0 {offsets = [0, 24], sizes = [8, 8], strides = [1, 1]} : vector<8x96xbf16> to vector<8x8xbf16>
    %59 = vector.extract_strided_slice %0 {offsets = [0, 56], sizes = [8, 8], strides = [1, 1]} : vector<8x96xbf16> to vector<8x8xbf16>
    %60 = vector.extract_strided_slice %0 {offsets = [0, 88], sizes = [8, 8], strides = [1, 1]} : vector<8x96xbf16> to vector<8x8xbf16>
    %cst_15 = arith.constant dense<0.000000e+00> : vector<8x8xf32>
    %61 = tpu.matmul %58, %59, %cst_15 {dimension_numbers = #tpu.dot_dimension_numbers<[1], [1], [0], [0], [0, 0, 1, 0], [], []>} : vector<8x8xbf16>, vector<8x8xbf16>, vector<8x8xf32> -> vector<8x8xf32>
    %cst_16 = arith.constant -1.000000e+30 : f32
    %62 = vector.broadcast %cst_16 : f32 to vector<8x8xf32>
    %63 = arith.select %3, %61, %62 : vector<8x8xi1>, vector<8x8xf32>
    %cst_17 = arith.constant dense<0xFF800000> : vector<8xf32>
    %64 = vector.multi_reduction <maximumf>, %63, %cst_17 [1] : vector<8x8xf32> to vector<8xf32>
    %65 = vector.shape_cast %64 : vector<8xf32> to vector<8x1xf32>
    %66 = vector.broadcast %65 : vector<8x1xf32> to vector<8x8xf32>
    %67 = arith.subf %63, %66 : vector<8x8xf32>
    %68 = math.exp %67 : vector<8x8xf32>
    %cst_18 = arith.constant dense<0.000000e+00> : vector<8xf32>
    %69 = vector.multi_reduction <add>, %68, %cst_18 [1] : vector<8x8xf32> to vector<8xf32>
    %70 = vector.shape_cast %69 : vector<8xf32> to vector<8x1xf32>
    %71 = tpu.reciprocal %70 {approx = true} : vector<8x1xf32> -> vector<8x1xf32>
    %72 = vector.broadcast %71 : vector<8x1xf32> to vector<8x8xf32>
    %73 = arith.mulf %68, %72 : vector<8x8xf32>
    %74 = arith.truncf %73 : vector<8x8xf32> to vector<8x8xbf16>
    %cst_19 = arith.constant dense<0.000000e+00> : vector<8x8xf32>
    %75 = tpu.matmul %74, %60, %cst_19 {dimension_numbers = #tpu.dot_dimension_numbers<[1], [0], [0], [1], [0, 0, 1, 1], [], []>} : vector<8x8xbf16>, vector<8x8xbf16>, vector<8x8xf32> -> vector<8x8xf32>
    %76 = tpu.concatenate %21, %39, %57, %75 in 1 : vector<8x8xf32>, vector<8x8xf32>, vector<8x8xf32>, vector<8x8xf32> -> vector<8x32xf32>
    %77 = arith.truncf %76 : vector<8x32xf32> to vector<8x32xbf16>
    %c0_20 = arith.constant 0 : index
    %c0_21 = arith.constant 0 : index
    %78 = vector.load %arg2[%c0_20, %c0_21] : memref<8x32xbf16, #tpu.memory_space<vmem>>, vector<8x32xbf16>
    tpu.vector_store %arg2[%c0_20, %c0_21], %77 {strides = array<i32>} : memref<8x32xbf16, #tpu.memory_space<vmem>>, vector<8x32xbf16>,
    return
  }
  func.func @transform_0(%arg0: i32) -> (i32, i32) {
    %c0_i32 = arith.constant 0 : i32
    %c0_i32_0 = arith.constant 0 : i32
    return %arg0, %c0_i32 : i32, i32
  }
  func.func @transform_1(%arg0: i32) -> (i32, i32) {
    %c0_i32 = arith.constant 0 : i32
    %c0_i32_0 = arith.constant 0 : i32
    return %arg0, %c0_i32 : i32, i32
  }
}

module attributes {stable_mosaic.version = 11 : i64} {
  func.func @_layernorm_kernel(%arg0: i32, %arg1: memref<16x32xf32, #tpu.memory_space<vmem>>, %arg2: memref<1x32xf32, #tpu.memory_space<vmem>>, %arg3: memref<1x32xf32, #tpu.memory_space<vmem>>, %arg4: memref<16x32xf32, #tpu.memory_space<vmem>>) attributes {dimension_semantics = [#tpu.dimension_semantics<parallel>], iteration_bounds = array<i64: 1>, scalar_prefetch = 0 : i64, scratch_operands = 0 : i64, tpu.core_type = #tpu.core_type<tc>, window_params = [{transform_indices = @transform_0, window_bounds = array<i64: 16, 32>}, {pipeline_mode = #tpu.pipeline_mode<synchronous>, transform_indices = @transform_1, window_bounds = array<i64: 1, 32>}, {pipeline_mode = #tpu.pipeline_mode<synchronous>, transform_indices = @transform_2, window_bounds = array<i64: 1, 32>}, {transform_indices = @transform_3, window_bounds = array<i64: 16, 32>}]} {
    %c0 = arith.constant 0 : index
    %c0_0 = arith.constant 0 : index
    %0 = vector.load %arg1[%c0, %c0_0] : memref<16x32xf32, #tpu.memory_space<vmem>>, vector<16x32xf32>
    %c0_1 = arith.constant 0 : index
    %c0_2 = arith.constant 0 : index
    %1 = vector.load %arg2[%c0_1, %c0_2] : memref<1x32xf32, #tpu.memory_space<vmem>>, vector<1x32xf32>
    %c0_3 = arith.constant 0 : index
    %c0_4 = arith.constant 0 : index
    %2 = vector.load %arg3[%c0_3, %c0_4] : memref<1x32xf32, #tpu.memory_space<vmem>>, vector<1x32xf32>
    %cst = arith.constant dense<0.000000e+00> : vector<16xf32>
    %3 = vector.multi_reduction <add>, %0, %cst [1] : vector<16x32xf32> to vector<16xf32>
    %4 = vector.shape_cast %3 : vector<16xf32> to vector<16x1xf32>
    %cst_5 = arith.constant 3.200000e+01 : f32
    %5 = vector.broadcast %cst_5 : f32 to vector<16x1xf32>
    %6 = arith.divf %4, %5 : vector<16x1xf32>
    %7 = vector.broadcast %6 : vector<16x1xf32> to vector<16x32xf32>
    %8 = arith.subf %0, %7 : vector<16x32xf32>
    %9 = arith.mulf %8, %8 : vector<16x32xf32>
    %cst_6 = arith.constant dense<0.000000e+00> : vector<16xf32>
    %10 = vector.multi_reduction <add>, %9, %cst_6 [1] : vector<16x32xf32> to vector<16xf32>
    %11 = vector.shape_cast %10 : vector<16xf32> to vector<16x1xf32>
    %cst_7 = arith.constant 3.200000e+01 : f32
    %12 = vector.broadcast %cst_7 : f32 to vector<16x1xf32>
    %13 = arith.divf %11, %12 : vector<16x1xf32>
    %14 = vector.broadcast %6 : vector<16x1xf32> to vector<16x32xf32>
    %15 = arith.subf %0, %14 : vector<16x32xf32>
    %cst_8 = arith.constant 9.99999974E-6 : f32
    %16 = vector.broadcast %cst_8 : f32 to vector<16x1xf32>
    %17 = arith.addf %13, %16 : vector<16x1xf32>
    %18 = math.rsqrt %17 : vector<16x1xf32>
    %19 = vector.broadcast %18 : vector<16x1xf32> to vector<16x32xf32>
    %20 = arith.mulf %15, %19 : vector<16x32xf32>
    %21 = vector.broadcast %1 : vector<1x32xf32> to vector<16x32xf32>
    %22 = arith.mulf %20, %21 : vector<16x32xf32>
    %23 = vector.broadcast %2 : vector<1x32xf32> to vector<16x32xf32>
    %24 = arith.addf %22, %23 : vector<16x32xf32>
    %c0_9 = arith.constant 0 : index
    %c0_10 = arith.constant 0 : index
    %25 = vector.load %arg4[%c0_9, %c0_10] : memref<16x32xf32, #tpu.memory_space<vmem>>, vector<16x32xf32>
    tpu.vector_store %arg4[%c0_9, %c0_10], %24 {strides = array<i32>} : memref<16x32xf32, #tpu.memory_space<vmem>>, vector<16x32xf32>,
    return
  }
  func.func @transform_0(%arg0: i32) -> (i32, i32) {
    %c0_i32 = arith.constant 0 : i32
    %c0_i32_0 = arith.constant 0 : i32
    return %arg0, %c0_i32 : i32, i32
  }
  func.func @transform_1(%arg0: i32) -> (i32, i32) {
    %c0_i32 = arith.constant 0 : i32
    %c0_i32_0 = arith.constant 0 : i32
    %c0_i32_1 = arith.constant 0 : i32
    return %c0_i32, %c0_i32_0 : i32, i32
  }
  func.func @transform_2(%arg0: i32) -> (i32, i32) {
    %c0_i32 = arith.constant 0 : i32
    %c0_i32_0 = arith.constant 0 : i32
    %c0_i32_1 = arith.constant 0 : i32
    return %c0_i32, %c0_i32_0 : i32, i32
  }
  func.func @transform_3(%arg0: i32) -> (i32, i32) {
    %c0_i32 = arith.constant 0 : i32
    %c0_i32_0 = arith.constant 0 : i32
    return %arg0, %c0_i32 : i32, i32
  }
}

module attributes {stable_mosaic.version = 11 : i64} {
  func.func @_attn_out_mlp_kernel(%arg0: i32, %arg1: memref<16x32xbf16, #tpu.memory_space<vmem>>, %arg2: memref<16x32xf32, #tpu.memory_space<vmem>>, %arg3: memref<32x32xbf16, #tpu.memory_space<vmem>>, %arg4: memref<1x32xf32, #tpu.memory_space<vmem>>, %arg5: memref<1x32xf32, #tpu.memory_space<vmem>>, %arg6: memref<1x32xf32, #tpu.memory_space<vmem>>, %arg7: memref<32x128xbf16, #tpu.memory_space<vmem>>, %arg8: memref<1x128xf32, #tpu.memory_space<vmem>>, %arg9: memref<128x32xbf16, #tpu.memory_space<vmem>>, %arg10: memref<1x32xf32, #tpu.memory_space<vmem>>, %arg11: memref<16x32xf32, #tpu.memory_space<vmem>>) attributes {dimension_semantics = [#tpu.dimension_semantics<parallel>], iteration_bounds = array<i64: 1>, scalar_prefetch = 0 : i64, scratch_operands = 0 : i64, tpu.core_type = #tpu.core_type<tc>, window_params = [{transform_indices = @transform_0, window_bounds = array<i64: 16, 32>}, {transform_indices = @transform_1, window_bounds = array<i64: 16, 32>}, {pipeline_mode = #tpu.pipeline_mode<synchronous>, transform_indices = @transform_2, window_bounds = array<i64: 32, 32>}, {pipeline_mode = #tpu.pipeline_mode<synchronous>, transform_indices = @transform_3, window_bounds = array<i64: 1, 32>}, {pipeline_mode = #tpu.pipeline_mode<synchronous>, transform_indices = @transform_4, window_bounds = array<i64: 1, 32>}, {pipeline_mode = #tpu.pipeline_mode<synchronous>, transform_indices = @transform_5, window_bounds = array<i64: 1, 32>}, {pipeline_mode = #tpu.pipeline_mode<synchronous>, transform_indices = @transform_6, window_bounds = array<i64: 32, 128>}, {pipeline_mode = #tpu.pipeline_mode<synchronous>, transform_indices = @transform_7, window_bounds = array<i64: 1, 128>}, {pipeline_mode = #tpu.pipeline_mode<synchronous>, transform_indices = @transform_8, window_bounds = array<i64: 128, 32>}, {pipeline_mode = #tpu.pipeline_mode<synchronous>, transform_indices = @transform_9, window_bounds = array<i64: 1, 32>}, {transform_indices = @transform_10, window_bounds = array<i64: 16, 32>}]} {
    %c0 = arith.constant 0 : index
    %c0_0 = arith.constant 0 : index
    %0 = vector.load %arg1[%c0, %c0_0] : memref<16x32xbf16, #tpu.memory_space<vmem>>, vector<16x32xbf16>
    %c0_1 = arith.constant 0 : index
    %c0_2 = arith.constant 0 : index
    %1 = vector.load %arg3[%c0_1, %c0_2] : memref<32x32xbf16, #tpu.memory_space<vmem>>, vector<32x32xbf16>
    %cst = arith.constant dense<0.000000e+00> : vector<16x32xf32>
    %2 = tpu.matmul %0, %1, %cst {dimension_numbers = #tpu.dot_dimension_numbers<[1], [0], [0], [1], [0, 0, 1, 1], [], []>} : vector<16x32xbf16>, vector<32x32xbf16>, vector<16x32xf32> -> vector<16x32xf32>
    %c0_3 = arith.constant 0 : index
    %c0_4 = arith.constant 0 : index
    %3 = vector.load %arg4[%c0_3, %c0_4] : memref<1x32xf32, #tpu.memory_space<vmem>>, vector<1x32xf32>
    %4 = vector.broadcast %3 : vector<1x32xf32> to vector<16x32xf32>
    %5 = arith.addf %2, %4 : vector<16x32xf32>
    %c0_5 = arith.constant 0 : index
    %c0_6 = arith.constant 0 : index
    %6 = vector.load %arg2[%c0_5, %c0_6] : memref<16x32xf32, #tpu.memory_space<vmem>>, vector<16x32xf32>
    %7 = arith.addf %6, %5 : vector<16x32xf32>
    %c0_7 = arith.constant 0 : index
    %c0_8 = arith.constant 0 : index
    %8 = vector.load %arg5[%c0_7, %c0_8] : memref<1x32xf32, #tpu.memory_space<vmem>>, vector<1x32xf32>
    %c0_9 = arith.constant 0 : index
    %c0_10 = arith.constant 0 : index
    %9 = vector.load %arg6[%c0_9, %c0_10] : memref<1x32xf32, #tpu.memory_space<vmem>>, vector<1x32xf32>
    %cst_11 = arith.constant dense<0.000000e+00> : vector<16xf32>
    %10 = vector.multi_reduction <add>, %7, %cst_11 [1] : vector<16x32xf32> to vector<16xf32>
    %11 = vector.shape_cast %10 : vector<16xf32> to vector<16x1xf32>
    %cst_12 = arith.constant 3.200000e+01 : f32
    %12 = vector.broadcast %cst_12 : f32 to vector<16x1xf32>
    %13 = arith.divf %11, %12 : vector<16x1xf32>
    %14 = vector.broadcast %13 : vector<16x1xf32> to vector<16x32xf32>
    %15 = arith.subf %7, %14 : vector<16x32xf32>
    %16 = arith.mulf %15, %15 : vector<16x32xf32>
    %cst_13 = arith.constant dense<0.000000e+00> : vector<16xf32>
    %17 = vector.multi_reduction <add>, %16, %cst_13 [1] : vector<16x32xf32> to vector<16xf32>
    %18 = vector.shape_cast %17 : vector<16xf32> to vector<16x1xf32>
    %cst_14 = arith.constant 3.200000e+01 : f32
    %19 = vector.broadcast %cst_14 : f32 to vector<16x1xf32>
    %20 = arith.divf %18, %19 : vector<16x1xf32>
    %21 = vector.broadcast %13 : vector<16x1xf32> to vector<16x32xf32>
    %22 = arith.subf %7, %21 : vector<16x32xf32>
    %cst_15 = arith.constant 9.99999974E-6 : f32
    %23 = vector.broadcast %cst_15 : f32 to vector<16x1xf32>
    %24 = arith.addf %20, %23 : vector<16x1xf32>
    %25 = math.rsqrt %24 : vector<16x1xf32>
    %26 = vector.broadcast %25 : vector<16x1xf32> to vector<16x32xf32>
    %27 = arith.mulf %22, %26 : vector<16x32xf32>
    %28 = vector.broadcast %8 : vector<1x32xf32> to vector<16x32xf32>
    %29 = arith.mulf %27, %28 : vector<16x32xf32>
    %30 = vector.broadcast %9 : vector<1x32xf32> to vector<16x32xf32>
    %31 = arith.addf %29, %30 : vector<16x32xf32>
    %32 = arith.truncf %31 : vector<16x32xf32> to vector<16x32xbf16>
    %c0_16 = arith.constant 0 : index
    %c0_17 = arith.constant 0 : index
    %33 = vector.load %arg7[%c0_16, %c0_17] : memref<32x128xbf16, #tpu.memory_space<vmem>>, vector<32x128xbf16>
    %cst_18 = arith.constant dense<0.000000e+00> : vector<16x128xf32>
    %34 = tpu.matmul %32, %33, %cst_18 {dimension_numbers = #tpu.dot_dimension_numbers<[1], [0], [0], [1], [0, 0, 1, 1], [], []>} : vector<16x32xbf16>, vector<32x128xbf16>, vector<16x128xf32> -> vector<16x128xf32>
    %c0_19 = arith.constant 0 : index
    %c0_20 = arith.constant 0 : index
    %35 = vector.load %arg8[%c0_19, %c0_20] : memref<1x128xf32, #tpu.memory_space<vmem>>, vector<1x128xf32>
    %36 = vector.broadcast %35 : vector<1x128xf32> to vector<16x128xf32>
    %37 = arith.addf %34, %36 : vector<16x128xf32>
    %cst_21 = arith.constant 1.702000e+00 : f32
    %38 = vector.broadcast %cst_21 : f32 to vector<16x128xf32>
    %39 = arith.mulf %38, %37 : vector<16x128xf32>
    %40 = arith.negf %39 : vector<16x128xf32>
    %41 = math.exp %40 : vector<16x128xf32>
    %cst_22 = arith.constant 1.000000e+00 : f32
    %42 = vector.broadcast %cst_22 : f32 to vector<16x128xf32>
    %43 = arith.addf %42, %41 : vector<16x128xf32>
    %44 = arith.divf %42, %43 : vector<16x128xf32>
    %45 = arith.mulf %37, %44 : vector<16x128xf32>
    %46 = arith.truncf %45 : vector<16x128xf32> to vector<16x128xbf16>
    %c0_23 = arith.constant 0 : index
    %c0_24 = arith.constant 0 : index
    %47 = vector.load %arg9[%c0_23, %c0_24] : memref<128x32xbf16, #tpu.memory_space<vmem>>, vector<128x32xbf16>
    %cst_25 = arith.constant dense<0.000000e+00> : vector<16x32xf32>
    %48 = tpu.matmul %46, %47, %cst_25 {dimension_numbers = #tpu.dot_dimension_numbers<[1], [0], [0], [1], [0, 0, 1, 1], [], []>} : vector<16x128xbf16>, vector<128x32xbf16>, vector<16x32xf32> -> vector<16x32xf32>
    %c0_26 = arith.constant 0 : index
    %c0_27 = arith.constant 0 : index
    %49 = vector.load %arg10[%c0_26, %c0_27] : memref<1x32xf32, #tpu.memory_space<vmem>>, vector<1x32xf32>
    %50 = vector.broadcast %49 : vector<1x32xf32> to vector<16x32xf32>
    %51 = arith.addf %48, %50 : vector<16x32xf32>
    %52 = arith.addf %7, %51 : vector<16x32xf32>
    %c0_28 = arith.constant 0 : index
    %c0_29 = arith.constant 0 : index
    %53 = vector.load %arg11[%c0_28, %c0_29] : memref<16x32xf32, #tpu.memory_space<vmem>>, vector<16x32xf32>
    tpu.vector_store %arg11[%c0_28, %c0_29], %52 {strides = array<i32>} : memref<16x32xf32, #tpu.memory_space<vmem>>, vector<16x32xf32>,
    return
  }
  func.func @transform_0(%arg0: i32) -> (i32, i32) {
    %c0_i32 = arith.constant 0 : i32
    %c0_i32_0 = arith.constant 0 : i32
    return %arg0, %c0_i32 : i32, i32
  }
  func.func @transform_1(%arg0: i32) -> (i32, i32) {
    %c0_i32 = arith.constant 0 : i32
    %c0_i32_0 = arith.constant 0 : i32
    return %arg0, %c0_i32 : i32, i32
  }
  func.func @transform_2(%arg0: i32) -> (i32, i32) {
    %c0_i32 = arith.constant 0 : i32
    %c0_i32_0 = arith.constant 0 : i32
    %c0_i32_1 = arith.constant 0 : i32
    return %c0_i32, %c0_i32_0 : i32, i32
  }
  func.func @transform_3(%arg0: i32) -> (i32, i32) {
    %c0_i32 = arith.constant 0 : i32
    %c0_i32_0 = arith.constant 0 : i32
    %c0_i32_1 = arith.constant 0 : i32
    return %c0_i32, %c0_i32_0 : i32, i32
  }
  func.func @transform_4(%arg0: i32) -> (i32, i32) {
    %c0_i32 = arith.constant 0 : i32
    %c0_i32_0 = arith.constant 0 : i32
    %c0_i32_1 = arith.constant 0 : i32
    return %c0_i32, %c0_i32_0 : i32, i32
  }
  func.func @transform_5(%arg0: i32) -> (i32, i32) {
    %c0_i32 = arith.constant 0 : i32
    %c0_i32_0 = arith.constant 0 : i32
    %c0_i32_1 = arith.constant 0 : i32
    return %c0_i32, %c0_i32_0 : i32, i32
  }
  func.func @transform_6(%arg0: i32) -> (i32, i32) {
    %c0_i32 = arith.constant 0 : i32
    %c0_i32_0 = arith.constant 0 : i32
    %c0_i32_1 = arith.constant 0 : i32
    return %c0_i32, %c0_i32_0 : i32, i32
  }
  func.func @transform_7(%arg0: i32) -> (i32, i32) {
    %c0_i32 = arith.constant 0 : i32
    %c0_i32_0 = arith.constant 0 : i32
    %c0_i32_1 = arith.constant 0 : i32
    return %c0_i32, %c0_i32_0 : i32, i32
  }
  func.func @transform_8(%arg0: i32) -> (i32, i32) {
    %c0_i32 = arith.constant 0 : i32
    %c0_i32_0 = arith.constant 0 : i32
    %c0_i32_1 = arith.constant 0 : i32
    return %c0_i32, %c0_i32_0 : i32, i32
  }
  func.func @transform_9(%arg0: i32) -> (i32, i32) {
    %c0_i32 = arith.constant 0 : i32
    %c0_i32_0 = arith.constant 0 : i32
    %c0_i32_1 = arith.constant 0 : i32
    return %c0_i32, %c0_i32_0 : i32, i32
  }
  func.func @transform_10(%arg0: i32) -> (i32, i32) {
    %c0_i32 = arith.constant 0 : i32
    %c0_i32_0 = arith.constant 0 : i32
    return %arg0, %c0_i32 : i32, i32
  }
}

module attributes {stable_mosaic.version = 11 : i64} {
  func.func @_linear_kernel(%arg0: i32, %arg1: memref<2x32xbf16, #tpu.memory_space<vmem>>, %arg2: memref<32x16xbf16, #tpu.memory_space<vmem>>, %arg3: memref<1x16xf32, #tpu.memory_space<vmem>>, %arg4: memref<2x16xf32, #tpu.memory_space<vmem>>) attributes {dimension_semantics = [#tpu.dimension_semantics<parallel>], iteration_bounds = array<i64: 1>, scalar_prefetch = 0 : i64, scratch_operands = 0 : i64, tpu.core_type = #tpu.core_type<tc>, window_params = [{pipeline_mode = #tpu.pipeline_mode<synchronous>, transform_indices = @transform_0, window_bounds = array<i64: 2, 32>}, {pipeline_mode = #tpu.pipeline_mode<synchronous>, transform_indices = @transform_1, window_bounds = array<i64: 32, 16>}, {pipeline_mode = #tpu.pipeline_mode<synchronous>, transform_indices = @transform_2, window_bounds = array<i64: 1, 16>}, {pipeline_mode = #tpu.pipeline_mode<synchronous>, transform_indices = @transform_3, window_bounds = array<i64: 2, 16>}]} {
    %c0 = arith.constant 0 : index
    %c0_0 = arith.constant 0 : index
    %0 = vector.load %arg1[%c0, %c0_0] : memref<2x32xbf16, #tpu.memory_space<vmem>>, vector<2x32xbf16>
    %c0_1 = arith.constant 0 : index
    %c0_2 = arith.constant 0 : index
    %1 = vector.load %arg2[%c0_1, %c0_2] : memref<32x16xbf16, #tpu.memory_space<vmem>>, vector<32x16xbf16>
    %cst = arith.constant dense<0.000000e+00> : vector<2x16xf32>
    %2 = tpu.matmul %0, %1, %cst {dimension_numbers = #tpu.dot_dimension_numbers<[1], [0], [0], [1], [0, 0, 1, 1], [], []>} : vector<2x32xbf16>, vector<32x16xbf16>, vector<2x16xf32> -> vector<2x16xf32>
    %c0_3 = arith.constant 0 : index
    %c0_4 = arith.constant 0 : index
    %3 = vector.load %arg3[%c0_3, %c0_4] : memref<1x16xf32, #tpu.memory_space<vmem>>, vector<1x16xf32>
    %4 = vector.broadcast %3 : vector<1x16xf32> to vector<2x16xf32>
    %5 = arith.addf %2, %4 : vector<2x16xf32>
    %c0_5 = arith.constant 0 : index
    %c0_6 = arith.constant 0 : index
    %6 = vector.load %arg4[%c0_5, %c0_6] : memref<2x16xf32, #tpu.memory_space<vmem>>, vector<2x16xf32>
    tpu.vector_store %arg4[%c0_5, %c0_6], %5 {strides = array<i32>} : memref<2x16xf32, #tpu.memory_space<vmem>>, vector<2x16xf32>,
    return
  }
  func.func @transform_0(%arg0: i32) -> (i32, i32) {
    %c0_i32 = arith.constant 0 : i32
    %c0_i32_0 = arith.constant 0 : i32
    %c0_i32_1 = arith.constant 0 : i32
    return %c0_i32, %c0_i32_0 : i32, i32
  }
  func.func @transform_1(%arg0: i32) -> (i32, i32) {
    %c0_i32 = arith.constant 0 : i32
    %c0_i32_0 = arith.constant 0 : i32
    %c0_i32_1 = arith.constant 0 : i32
    return %c0_i32, %c0_i32_0 : i32, i32
  }
  func.func @transform_2(%arg0: i32) -> (i32, i32) {
    %c0_i32 = arith.constant 0 : i32
    %c0_i32_0 = arith.constant 0 : i32
    %c0_i32_1 = arith.constant 0 : i32
    return %c0_i32, %c0_i32_0 : i32, i32
  }
  func.func @transform_3(%arg0: i32) -> (i32, i32) {
    %c0_i32 = arith.constant 0 : i32
    %c0_i32_0 = arith.constant 0 : i32
    %c0_i32_1 = arith.constant 0 : i32
    return %c0_i32, %c0_i32_0 : i32, i32
  }
}

</mosaic_0001>

<llo_original>
// kernel: clip_text_forward.14
$region0: #{clip_text_forward.14}
  #allocation0 [shape = 'u32[]', space=smem, size = 0x4, offset = 0x4, fixed_abs, tag = 'smem constant byte address 0x4 - core index']
  #allocation1 [shape = 'u32[144,128]{1,0:T(1,128)}', space=vmem, size = 0x12000, scoped, tag = 'internal scratch']
  %s0 = inlined_call_operand.vmem [shape: f32[16,32], index: 0, kind: input, shape index: {}]
  %s1 = inlined_call_operand.vmem [shape: f32[1,32], index: 1, kind: input, shape index: {}]
  %s2 = inlined_call_operand.vmem [shape: f32[1,32], index: 2, kind: input, shape index: {}]
  %s3 = inlined_call_operand.vmem [shape: f32[16,32], index: 3, kind: output, shape index: {}]
  %s4 = sld [smem:[#allocation0]]
  $region22: #{clip_text_forward.14} parent=0
    _
  %s6 = ssub.s32 1, %s4
  %s7 = scalar_select 0, %s6, %s4
  // Predicated region
  $region2: #{clip_text_forward.14} parent=0 // pred_check
    _
  $region3: #{clip_text_forward.14} parent=0 // pred_check_branch
    %9 = sbr.rel (0) target = $region5
  $region4: #{clip_text_forward.14} parent=0 // pred_region
    _
  $region5: #{clip_text_forward.14} parent=0 // pred_fallthru
    _
  // Predicated region
  $region6: #{clip_text_forward.14} parent=0 // pred_check
    _
  $region7: #{clip_text_forward.14} parent=0 // pred_check_branch
    %11 = sbr.rel (0) target = $region9
  $region8: #{clip_text_forward.14} parent=0 // pred_region
    _
  $region9: #{clip_text_forward.14} parent=0 // pred_fallthru
    _
  // Predicated region
  $region10: #{clip_text_forward.14} parent=0 // pred_check
    _
  $region11: #{clip_text_forward.14} parent=0 // pred_check_branch
    %13 = sbr.rel (0) target = $region13
  $region12: #{clip_text_forward.14} parent=0 // pred_region
    _
  $region13: #{clip_text_forward.14} parent=0 // pred_fallthru
    _
  %v14 = vld [vmem:[%s0] sm:$0xff]
  %v15 = vld [vmem:[%s0 + $0x8] sm:$0xff]
  %v16 = vld [vmem:[%s1] sm:$0x1]
  %v17 = vld [vmem:[%s2] sm:$0x1]
  %vm18 = vcmask 261120
  %v19 = vsel %vm18, %v14, 0.0
  %20 = vadd.xlane.f32.xlu0 %v19
  %v21 = vpop.xlane.xlu0 %20
  %v22 = vsel %vm18, %v15, 0.0
  %23 = vadd.xlane.f32.xlu0 %v22
  %v24 = vpop.xlane.xlu0 %23
  %v25 = vrcp.pop 32.0
  %v26 = vmul.f32 %v21, %v25
  %v27 = vmul.f32 %v24, %v25
  %v28 = vsub.f32 %v14, %v26
  %v29 = vsub.f32 %v15, %v27
  %v30 = vmul.f32 %v28, %v28
  %v31 = vmul.f32 %v29, %v29
  %v32 = vsel %vm18, %v30, 0.0
  %33 = vadd.xlane.f32.xlu0 %v32
  %v34 = vpop.xlane.xlu0 %33
  %v35 = vsel %vm18, %v31, 0.0
  %36 = vadd.xlane.f32.xlu0 %v35
  %v37 = vpop.xlane.xlu0 %36
  %v38 = vmul.f32 %v34, %v25
  %v39 = vmul.f32 %v37, %v25
  %v40 = vadd.f32 %v38, 1e-05
  %v41 = vadd.f32 %v39, 1e-05
  %v42 = vrsqrt.pop %v40
  %v43 = vrsqrt.pop %v41
  %v44 = vmul.f32 %v28, %v42
  %v45 = vmul.f32 %v29, %v43
  %v47 = vlaneseq
  %v48 = vshrl.u32 %v47, 7
  %v49 = vsub.s32 0, %v48
  %v50 = vrot.slane %v16, %v49
  %v52 = vmul.f32 %v44, %v50
  %v53 = vmul.f32 %v45, %v50
  %v55 = vlaneseq
  %v56 = vshrl.u32 %v55, 7
  %v57 = vsub.s32 0, %v56
  %v58 = vrot.slane %v17, %v57
  %v60 = vadd.f32 %v52, %v58
  %v61 = vadd.f32 %v53, %v58
  %62 = vst.msk [vmem:[%s3] sm:$0xff] %vm18, %v60
  %63 = vst.msk [vmem:[%s3 + $0x8] sm:$0xff] %vm18, %v61
  // Predicated region
  $region14: #{clip_text_forward.14} parent=0 // pred_check
    _
  $region15: #{clip_text_forward.14} parent=0 // pred_check_branch
    %65 = sbr.rel (0) target = $region17
  $region16: #{clip_text_forward.14} parent=0 // pred_region
    _
  $region17: #{clip_text_forward.14} parent=0 // pred_fallthru
    _
  // Predicated region
  $region18: #{clip_text_forward.14} parent=0 // pred_check
    _
  $region19: #{clip_text_forward.14} parent=0 // pred_check_branch
    %67 = sbr.rel (0) target = $region21
  $region20: #{clip_text_forward.14} parent=0 // pred_region
    _
  $region21: #{clip_text_forward.14} parent=0 // pred_fallthru
    _

// kernel: clip_text_forward.8
$region0: #{clip_text_forward.8}
  #allocation0 [shape = 'u32[]', space=smem, size = 0x4, offset = 0x4, fixed_abs, tag = 'smem constant byte address 0x4 - core index']
  #allocation1 [shape = 'u32[144,128]{1,0:T(1,128)}', space=vmem, size = 0x12000, scoped, tag = 'internal scratch']
  %s0 = inlined_call_operand.vmem [shape: f32[16,32], index: 0, kind: input, shape index: {}]
  %s1 = inlined_call_operand.vmem [shape: f32[1,32], index: 1, kind: input, shape index: {}]
  %s2 = inlined_call_operand.vmem [shape: f32[1,32], index: 2, kind: input, shape index: {}]
  %s3 = inlined_call_operand.vmem [shape: bf16[32,96], index: 3, kind: input, shape index: {}]
  %s4 = inlined_call_operand.vmem [shape: f32[1,96], index: 4, kind: input, shape index: {}]
  %s5 = inlined_call_operand.vmem [shape: bf16[16,96], index: 5, kind: output, shape index: {}]
  %s6 = sld [smem:[#allocation0]]
  $region30: #{clip_text_forward.8} parent=0
    _
  %s8 = ssub.s32 1, %s6
  %s9 = scalar_select 0, %s8, %s6
  // Predicated region
  $region2: #{clip_text_forward.8} parent=0 // pred_check
    _
  $region3: #{clip_text_forward.8} parent=0 // pred_check_branch
    %11 = sbr.rel (0) target = $region5
  $region4: #{clip_text_forward.8} parent=0 // pred_region
    _
  $region5: #{clip_text_forward.8} parent=0 // pred_fallthru
    _
  // Predicated region
  $region6: #{clip_text_forward.8} parent=0 // pred_check
    _
  $region7: #{clip_text_forward.8} parent=0 // pred_check_branch
    %13 = sbr.rel (0) target = $region9
  $region8: #{clip_text_forward.8} parent=0 // pred_region
    _
  $region9: #{clip_text_forward.8} parent=0 // pred_fallthru
    _
  // Predicated region
  $region10: #{clip_text_forward.8} parent=0 // pred_check
    _
  $region11: #{clip_text_forward.8} parent=0 // pred_check_branch
    %15 = sbr.rel (0) target = $region13
  $region12: #{clip_text_forward.8} parent=0 // pred_region
    _
  $region13: #{clip_text_forward.8} parent=0 // pred_fallthru
    _
  // Predicated region
  $region14: #{clip_text_forward.8} parent=0 // pred_check
    _
  $region15: #{clip_text_forward.8} parent=0 // pred_check_branch
    %17 = sbr.rel (0) target = $region17
  $region16: #{clip_text_forward.8} parent=0 // pred_region
    _
  $region17: #{clip_text_forward.8} parent=0 // pred_fallthru
    _
  // Predicated region
  $region18: #{clip_text_forward.8} parent=0 // pred_check
    _
  $region19: #{clip_text_forward.8} parent=0 // pred_check_branch
    %19 = sbr.rel (0) target = $region21
  $region20: #{clip_text_forward.8} parent=0 // pred_region
    _
  $region21: #{clip_text_forward.8} parent=0 // pred_fallthru
    _
  %v21 = vld [vmem:[%s0] sm:$0xff]
  %v22 = vld [vmem:[%s0 + $0x8] sm:$0xff]
  %v23 = vld [vmem:[%s1] sm:$0x1]
  %v24 = vld [vmem:[%s2] sm:$0x1]
  %vm25 = vcmask 261120
  %v26 = vsel %vm25, %v21, 0.0
  %27 = vadd.xlane.f32.xlu0 %v26
  %v28 = vpop.xlane.xlu0 %27
  %v29 = vsel %vm25, %v22, 0.0
  %30 = vadd.xlane.f32.xlu0 %v29
  %v31 = vpop.xlane.xlu0 %30
  %v32 = vrcp.pop 32.0
  %v33 = vmul.f32 %v28, %v32
  %v34 = vmul.f32 %v31, %v32
  %v35 = vsub.f32 %v21, %v33
  %v36 = vsub.f32 %v22, %v34
  %v37 = vmul.f32 %v35, %v35
  %v38 = vmul.f32 %v36, %v36
  %v39 = vsel %vm25, %v37, 0.0
  %40 = vadd.xlane.f32.xlu0 %v39
  %v41 = vpop.xlane.xlu0 %40
  %v42 = vsel %vm25, %v38, 0.0
  %43 = vadd.xlane.f32.xlu0 %v42
  %v44 = vpop.xlane.xlu0 %43
  %v45 = vmul.f32 %v41, %v32
  %v46 = vmul.f32 %v44, %v32
  %v47 = vadd.f32 %v45, 1e-05
  %v48 = vadd.f32 %v46, 1e-05
  %v49 = vrsqrt.pop %v47
  %v50 = vrsqrt.pop %v48
  %v51 = vmul.f32 %v35, %v49
  %v52 = vmul.f32 %v36, %v50
  %v54 = vlaneseq
  %v55 = vshrl.u32 %v54, 7
  %v56 = vsub.s32 0, %v55
  %v57 = vrot.slane %v23, %v56
  %v59 = vmul.f32 %v51, %v57
  %v60 = vmul.f32 %v52, %v57
  %v62 = vlaneseq
  %v63 = vshrl.u32 %v62, 7
  %v64 = vsub.s32 0, %v63
  %v65 = vrot.slane %v24, %v64
  %v67 = vadd.f32 %v59, %v65
  %v68 = vadd.f32 %v60, %v65
  %v69 = vpack.c.bf16 %v68, %v67
  %v70 = vld [vmem:[%s3] sm:$0xf]
  %v71 = vld [vmem:[%s3 + $0x4] sm:$0xf]
  %v72 = vld [vmem:[%s3 + $0x8] sm:$0xf]
  %v73 = vld [vmem:[%s3 + $0xc] sm:$0xf]
  %v74 = vld [vmem:[%s4] sm:$0x1]
  %v76 = vlaneseq
  %v77 = vshrl.u32 %v76, 7
  %v78 = vsub.s32 0, %v77
  %v79 = vrot.slane %v74, %v78
  %v85 = vunpack.c.l.b16 %v70
  %v86 = vunpack.c.l.b16 %v71
  %v87 = vunpack.c.l.b16 %v72
  %v88 = vunpack.c.l.b16 %v73
  %v89 = vpack.c.b16 %v86, %v85
  %v90 = vpack.c.b16 %v88, %v87
  %v94 = vsel %vm25, %v69, 0
  %96 = vmatprep.subr.bf16.mxu0 0
  %97 = vmatpush1.bf16.msra.mxu0 %v89
  %98 = vmatprep.subr.bf16.mxu0 0
  %99 = vmatpush1.bf16.msra.mxu0 %v90
  %100 = vmatprep.subr.bf16.mxu0 0
  %101 = vmatpush1.bf16.msra.mxu0 0
  %102 = vmatprep.subr.bf16.mxu0 0
  %103 = vmatpush1.bf16.msra.mxu0 0
  %104 = vmatprep.subr.bf16.mxu0 0
  %105 = vmatpush1.bf16.msra.mxu0 0
  %106 = vmatprep.subr.bf16.mxu0 0
  %107 = vmatpush1.bf16.msra.mxu0 0
  %108 = vmatprep.subr.bf16.mxu0 0
  %109 = vmatpush1.bf16.msra.mxu0 0
  %110 = vmatprep.subr.bf16.mxu0 0
  %111 = vmatpush1.bf16.msra.mxu0 0
  %112 = vmatprep.subr.bf16.mxu0 0
  %113 = vmatpush1.bf16.msra.mxu0 0
  %114 = vmatprep.subr.bf16.mxu0 0
  %115 = vmatpush1.bf16.msra.mxu0 0
  %116 = vmatprep.subr.bf16.mxu0 0
  %117 = vmatpush1.bf16.msra.mxu0 0
  %118 = vmatprep.subr.bf16.mxu0 0
  %119 = vmatpush1.bf16.msra.mxu0 0
  %120 = vmatprep.subr.bf16.mxu0 0
  %121 = vmatpush1.bf16.msra.mxu0 0
  %122 = vmatprep.subr.bf16.mxu0 0
  %123 = vmatpush1.bf16.msra.mxu0 0
  %124 = vmatprep.subr.bf16.mxu0 0
  %125 = vmatpush1.bf16.msra.mxu0 0
  %126 = vmatprep.subr.bf16.mxu0 0
  %127 = vmatpush1.bf16.msra.mxu0 0
  %128 = vmatprep.mubr.bf16.mxu0 0
  %129 = vmatmul.mubr.bf16.gmra.mrb[0].mxu0 %v94
  %v130 = vpop.f32.mrb[0].mxu0
  %v131 = vadd.f32 %v79, %v130
  %v132 = vpop.f32.mrb[0].mxu0
  %v133 = vpop.f32.mrb[0].mxu0
  %v134 = vadd.f32 %v79, %v133
  %v135 = vpop.f32.mrb[0].mxu0
  %136 = vdwg.mxu0
  %v137 = vpack.c.bf16 %v134, %v131
  %v139 = vunpack.c.l.b16 %v137
  %v140 = vunpack.c.h.b16 %v137
  %v141 = vpack.c.b16 %v139, %v139
  %v142 = vpack.c.b16 %v140, %v140
  %vm145 = vcmask 781312
  %146 = vst.msk [vmem:[%s5] sm:$0xf] %vm145, %v141
  %147 = vst.msk [vmem:[%s5 + $0x4] sm:$0xf] %vm145, %v142
  // Predicated region
  $region22: #{clip_text_forward.8} parent=0 // pred_check
    _
  $region23: #{clip_text_forward.8} parent=0 // pred_check_branch
    %149 = sbr.rel (0) target = $region25
  $region24: #{clip_text_forward.8} parent=0 // pred_region
    _
  $region25: #{clip_text_forward.8} parent=0 // pred_fallthru
    _
  // Predicated region
  $region26: #{clip_text_forward.8} parent=0 // pred_check
    _
  $region27: #{clip_text_forward.8} parent=0 // pred_check_branch
    %151 = sbr.rel (0) target = $region29
  $region28: #{clip_text_forward.8} parent=0 // pred_region
    _
  $region29: #{clip_text_forward.8} parent=0 // pred_fallthru
    _

// kernel: clip_text_forward.9
$region0: #{clip_text_forward.9}
  #allocation0 [shape = 'u32[]', space=smem, size = 0x4, offset = 0x4, fixed_abs, tag = 'smem constant byte address 0x4 - core index']
  #allocation1 [shape = 'u32[144,128]{1,0:T(1,128)}', space=vmem, size = 0x12000, scoped, tag = 'internal scratch']
  %s0 = inlined_call_operand.vmem [shape: bf16[16,96], index: 0, kind: input, shape index: {}]
  %s1 = inlined_call_operand.vmem [shape: bf16[16,32], index: 1, kind: output, shape index: {}]
  %s2 = sld [smem:[#allocation0]]
  $region37: #{clip_text_forward.9} parent=0
    _
  %s4 = ssub.s32 1, %s2
  %s5 = scalar_select 0, %s4, %s2
  loop: start=0, step=1, limit=4
  $region2: #{clip_text_forward.9} parent=0 // loop_pre_header
    _
  $region3: #{clip_text_forward.9} parent=0 // loop_header
    %s7 = sphi 0, %s11
    %p8 = scmp.ge.s32.totalorder %s7, 4
    %s17 = sphi 0, %s19
    %s20 = sphi 0, %s17
    %s21 = sphi 0, %s20
    %s37 = sphi 0, %s21
    %s43 = sphi 0, %s45
    %s46 = sphi 0, %s43
    %s47 = sphi 0, %s46
    %s63 = sphi 0, %s47
  $region4: #{clip_text_forward.9} parent=0 // loop_header_branch
    %10 = sbr.rel (%p8) target = $region8
  $region5: #{clip_text_forward.9} parent=0 // loop_body
    %s12 = ssub.s32 %s7, 1
    %s13 = ssub.s32 %s7, 2
    %s14 = sadd.s32 %s7, 1
    %s15 = ssub.s32 %s7, %s14
    %p16 = scmp.eq.s32.totalorder %s15, 0
    %s18 = sadd.s32 %s17, 1
    %s19 = scalar_select %p16, %s17, %s18
    %p22 = pneg %p16
    %p23 = scmp.eq.s32.totalorder %s7, 1
    %p24 = por %p22, %p23
    %p25 = scmp.ne.s32.totalorder %s17, %s20
    %p26 = scmp.eq.s32.totalorder %s7, 0
    %p27 = por %p25, %p26
    %p28 = scmp.ne.s32.totalorder %s17, %s20
    %p29 = scmp.eq.s32.totalorder %s12, 1
    %p30 = por %p28, %p29
    %p31 = scmp.ne.s32.totalorder %s20, %s21
    %p32 = scmp.eq.s32.totalorder %s12, 0
    %p33 = por %p31, %p32
    %p34 = scmp.ne.s32.totalorder %s20, %s21
    %p35 = scmp.eq.s32.totalorder %s13, 1
    %p36 = por %p34, %p35
    %p38 = scmp.ne.s32.totalorder %s21, %s37
    %p39 = scmp.eq.s32.totalorder %s13, 0
    %p40 = por %p38, %p39
    %s41 = ssub.s32 %s7, %s14
    %p42 = scmp.eq.s32.totalorder %s41, 0
    %s44 = sadd.s32 %s43, 1
    %s45 = scalar_select %p42, %s43, %s44
    %p48 = pneg %p42
    %p49 = scmp.eq.s32.totalorder %s7, 1
    %p50 = por %p48, %p49
    %p51 = scmp.ne.s32.totalorder %s43, %s46
    %p52 = scmp.eq.s32.totalorder %s7, 0
    %p53 = por %p51, %p52
    %p54 = scmp.ne.s32.totalorder %s43, %s46
    %p55 = scmp.eq.s32.totalorder %s12, 1
    %p56 = por %p54, %p55
    %p57 = scmp.ne.s32.totalorder %s46, %s47
    %p58 = scmp.eq.s32.totalorder %s12, 0
    %p59 = por %p57, %p58
    %p60 = scmp.ne.s32.totalorder %s46, %s47
    %p61 = scmp.eq.s32.totalorder %s13, 1
    %p62 = por %p60, %p61
    %p64 = scmp.ne.s32.totalorder %s47, %s63
    %p65 = scmp.eq.s32.totalorder %s13, 0
    %p66 = por %p64, %p65
    %p67 = scmp.le.s32.totalorder 1, %s7
    %p68 = scmp.lt.s32.totalorder %s7, 3
    %p69 = pnand %p67, %p68
    %p70 = pneg %p69
    // Predicated region
    $region9: #{clip_text_forward.9} parent=5 // pred_check
      _
    $region10: #{clip_text_forward.9} parent=5 // pred_check_branch
      %72 = sbr.rel (%p69) target = $region12
    $region11: #{clip_text_forward.9} parent=5 // pred_region
      %s73 = ssub.s32 %s7, 1
    $region12: #{clip_text_forward.9} parent=5 // pred_fallthru
      _
    %p74 = scmp.lt.s32.totalorder %s7, 2
    // Predicated region
    $region13: #{clip_text_forward.9} parent=5 // pred_check
      %p75 = pneg %p74
    $region14: #{clip_text_forward.9} parent=5 // pred_check_branch
      %77 = sbr.rel (%p75) target = $region16
    $region15: #{clip_text_forward.9} parent=5 // pred_region
      // Predicated region
      $region17: #{clip_text_forward.9} parent=15 // pred_check
        %p78 = pneg %p27
      $region18: #{clip_text_forward.9} parent=15 // pred_check_branch
        %80 = sbr.rel (%p78) target = $region20
      $region19: #{clip_text_forward.9} parent=15 // pred_region
        %p81 = scmp.lt.s32.totalorder %s7, 1
        %s82 = scalar_select %p81, %s7, 1
        %s83 = smul.addr %s82, 4
        %s84 = scalar_lea.vmem %s0, %s83
      $region20: #{clip_text_forward.9} parent=15 // pred_fallthru
        _
    $region16: #{clip_text_forward.9} parent=5 // pred_fallthru
      _
    %p85 = scmp.le.s32.totalorder 1, %s7
    %p86 = scmp.lt.s32.totalorder %s7, 3
    %p87 = pnand %p85, %p86
    %p88 = pneg %p87
    // Predicated region
    $region21: #{clip_text_forward.9} parent=5 // pred_check
      _
    $region22: #{clip_text_forward.9} parent=5 // pred_check_branch
      %90 = sbr.rel (%p87) target = $region24
    $region23: #{clip_text_forward.9} parent=5 // pred_region
      %s91 = ssub.s32 %s7, 1
      %p92 = scmp.lt.s32.totalorder %s12, 1
      %s93 = scalar_select %p92, %s12, 1
      %s94 = smul.addr %s93, 4
      %s95 = scalar_lea.vmem %s0, %s94
      %p96 = pneg %p33
      %p97 = pneg %p30
      %p98 = pneg %p59
      %p99 = pneg %p56
      %p100 = scmp.lt.s32.totalorder %s12, 1
      %s101 = scalar_select %p100, %s12, 1
      %s102 = smul.addr %s101, 4
      %s103 = scalar_lea.vmem %s1, %s102
      %p104 = scmp.lt.s32.totalorder %s12, 1
      %s105 = scalar_select %p104, %s12, 1
      %s106 = smul.addr %s105, 4
      %s107 = scalar_lea.vmem %s0, %s106
      %p108 = scmp.lt.s32.totalorder %s12, 1
      %s109 = scalar_select %p108, %s12, 1
      %s110 = smul.addr %s109, 4
      %s111 = scalar_lea.vmem %s1, %s110
      %v113 = vld [vmem:[%s107] sm:$0xf]
      %v114 = vlaneseq
      %v115 = vshrl.u32 %v114, 7
      %v116 = vlaneseq
      %v117 = vand.u32 %v116, 127
      %vm118 = vcmp.le.s32.totalorder %v117, %v115
      %v120 = vunpack.c.l.b16 %v113
      %v121 = vpack.c.b16 %v120, %v120
      %122 = vrot.lane.b32.xlu0 %v121, 96
      %v123 = vpop.permute.xlu0 %122
      %vm124 = vcmask 64512
      %v126 = vsel %vm124, %v113, 0
      %v129 = vsel %vm124, %v123, 0
      %131 = vmatprep.subr.bf16.mxu0 0
      %132 = vmatpush1.bf16.xpose.msra.mxu0 %v129
      %133 = vmatprep.subr.bf16.mxu0 0
      %134 = vmatpush1.bf16.xpose.msra.mxu0 0
      %135 = vmatprep.subr.bf16.mxu0 0
      %136 = vmatpush1.bf16.xpose.msra.mxu0 0
      %137 = vmatprep.subr.bf16.mxu0 0
      %138 = vmatpush1.bf16.xpose.msra.mxu0 0
      %139 = vmatprep.subr.bf16.mxu0 0
      %140 = vmatpush1.bf16.xpose.msra.mxu0 0
      %141 = vmatprep.subr.bf16.mxu0 0
      %142 = vmatpush1.bf16.xpose.msra.mxu0 0
      %143 = vmatprep.subr.bf16.mxu0 0
      %144 = vmatpush1.bf16.xpose.msra.mxu0 0
      %145 = vmatprep.subr.bf16.mxu0 0
      %146 = vmatpush1.bf16.xpose.msra.mxu0 0
      %147 = vmatprep.subr.bf16.mxu0 0
      %148 = vmatpush1.bf16.xpose.msra.mxu0 0
      %149 = vmatprep.subr.bf16.mxu0 0
      %150 = vmatpush1.bf16.xpose.msra.mxu0 0
      %151 = vmatprep.subr.bf16.mxu0 0
      %152 = vmatpush1.bf16.xpose.msra.mxu0 0
      %153 = vmatprep.subr.bf16.mxu0 0
      %154 = vmatpush1.bf16.xpose.msra.mxu0 0
      %155 = vmatprep.subr.bf16.mxu0 0
      %156 = vmatpush1.bf16.xpose.msra.mxu0 0
      %157 = vmatprep.subr.bf16.mxu0 0
      %158 = vmatpush1.bf16.xpose.msra.mxu0 0
      %159 = vmatprep.subr.bf16.mxu0 0
      %160 = vmatpush1.bf16.xpose.msra.mxu0 0
      %161 = vmatprep.subr.bf16.mxu0 0
      %162 = vmatpush1.bf16.xpose.msra.mxu0 0
      %163 = vmatprep.mubr.bf16.mxu0 0
      %164 = vmatmul.mubr.bf16.gmra.mrb[0].mxu0 %v126
      %v165 = vpop.f32.mrb[0].mxu0
      %v166 = vadd.f32 0.0, %v165
      %v167 = vpop.f32.mrb[0].mxu0
      %v168 = vpop.f32.mrb[0].mxu0
      %v169 = vpop.f32.mrb[0].mxu0
      %170 = vdwg.mxu0
      %v171 = vsel %vm118, %v166, -1e+30
      %v172 = vsel %vm124, %v171, -inf
      %173 = vmax.xlane.f32.xlu0 %v172
      %v174 = vpop.xlane.xlu0 %173
      %v175 = vsub.f32 %v171, %v174
      %v176 = vmul.f32 %v175, 1.442695
      %v177 = vpow.pop %v176
      %v178 = vsel %vm124, %v177, 0.0
      %179 = vadd.xlane.f32.xlu0 %v178
      %v180 = vpop.xlane.xlu0 %179
      %v181 = vrcp.pop %v180
      %v182 = vmul.f32 %v177, %v181
      %v183 = vpack.c.bf16 %v182, %v182
      %184 = vrot.lane.b32.xlu0 %v121, 64
      %v185 = vpop.permute.xlu0 %184
      %v187 = vsel %vm124, %v183, 0
      %vm189 = vcmask 1043456
      %v191 = vsel %vm189, %v185, 0
      %193 = vmatprep.subr.bf16.mxu0 0
      %194 = vmatpush1.bf16.msra.mxu0 %v191
      %195 = vmatprep.subr.bf16.mxu0 0
      %196 = vmatpush1.bf16.msra.mxu0 0
      %197 = vmatprep.subr.bf16.mxu0 0
      %198 = vmatpush1.bf16.msra.mxu0 0
      %199 = vmatprep.subr.bf16.mxu0 0
      %200 = vmatpush1.bf16.msra.mxu0 0
      %201 = vmatprep.subr.bf16.mxu0 0
      %202 = vmatpush1.bf16.msra.mxu0 0
      %203 = vmatprep.subr.bf16.mxu0 0
      %204 = vmatpush1.bf16.msra.mxu0 0
      %205 = vmatprep.subr.bf16.mxu0 0
      %206 = vmatpush1.bf16.msra.mxu0 0
      %207 = vmatprep.subr.bf16.mxu0 0
      %208 = vmatpush1.bf16.msra.mxu0 0
      %209 = vmatprep.subr.bf16.mxu0 0
      %210 = vmatpush1.bf16.msra.mxu0 0
      %211 = vmatprep.subr.bf16.mxu0 0
      %212 = vmatpush1.bf16.msra.mxu0 0
      %213 = vmatprep.subr.bf16.mxu0 0
      %214 = vmatpush1.bf16.msra.mxu0 0
      %215 = vmatprep.subr.bf16.mxu0 0
      %216 = vmatpush1.bf16.msra.mxu0 0
      %217 = vmatprep.subr.bf16.mxu0 0
      %218 = vmatpush1.bf16.msra.mxu0 0
      %219 = vmatprep.subr.bf16.mxu0 0
      %220 = vmatpush1.bf16.msra.mxu0 0
      %221 = vmatprep.subr.bf16.mxu0 0
      %222 = vmatpush1.bf16.msra.mxu0 0
      %223 = vmatprep.subr.bf16.mxu0 0
      %224 = vmatpush1.bf16.msra.mxu0 0
      %225 = vmatprep.mubr.bf16.mxu0 0
      %226 = vmatmul.mubr.bf16.gmra.mrb[0].mxu0 %v187
      %v227 = vpop.f32.mrb[0].mxu0
      %v228 = vadd.f32 0.0, %v227
      %v229 = vpop.f32.mrb[0].mxu0
      %v230 = vpop.f32.mrb[0].mxu0
      %v231 = vpop.f32.mrb[0].mxu0
      %232 = vdwg.mxu0
      %233 = vrot.lane.b32.xlu0 %v121, 120
      %v234 = vpop.permute.xlu0 %233
      %235 = vrot.lane.b32.xlu0 %v121, 88
      %v236 = vpop.permute.xlu0 %235
      %v238 = vsel %vm124, %v234, 0
      %v241 = vsel %vm124, %v236, 0
      %243 = vmatprep.subr.bf16.mxu0 0
      %244 = vmatpush1.bf16.xpose.msra.mxu0 %v241
      %245 = vmatprep.subr.bf16.mxu0 0
      %246 = vmatpush1.bf16.xpose.msra.mxu0 0
      %247 = vmatprep.subr.bf16.mxu0 0
      %248 = vmatpush1.bf16.xpose.msra.mxu0 0
      %249 = vmatprep.subr.bf16.mxu0 0
      %250 = vmatpush1.bf16.xpose.msra.mxu0 0
      %251 = vmatprep.subr.bf16.mxu0 0
      %252 = vmatpush1.bf16.xpose.msra.mxu0 0
      %253 = vmatprep.subr.bf16.mxu0 0
      %254 = vmatpush1.bf16.xpose.msra.mxu0 0
      %255 = vmatprep.subr.bf16.mxu0 0
      %256 = vmatpush1.bf16.xpose.msra.mxu0 0
      %257 = vmatprep.subr.bf16.mxu0 0
      %258 = vmatpush1.bf16.xpose.msra.mxu0 0
      %259 = vmatprep.subr.bf16.mxu0 0
      %260 = vmatpush1.bf16.xpose.msra.mxu0 0
      %261 = vmatprep.subr.bf16.mxu0 0
      %262 = vmatpush1.bf16.xpose.msra.mxu0 0
      %263 = vmatprep.subr.bf16.mxu0 0
      %264 = vmatpush1.bf16.xpose.msra.mxu0 0
      %265 = vmatprep.subr.bf16.mxu0 0
      %266 = vmatpush1.bf16.xpose.msra.mxu0 0
      %267 = vmatprep.subr.bf16.mxu0 0
      %268 = vmatpush1.bf16.xpose.msra.mxu0 0
      %269 = vmatprep.subr.bf16.mxu0 0
      %270 = vmatpush1.bf16.xpose.msra.mxu0 0
      %271 = vmatprep.subr.bf16.mxu0 0
      %272 = vmatpush1.bf16.xpose.msra.mxu0 0
      %273 = vmatprep.subr.bf16.mxu0 0
      %274 = vmatpush1.bf16.xpose.msra.mxu0 0
      %275 = vmatprep.mubr.bf16.mxu0 0
      %276 = vmatmul.mubr.bf16.gmra.mrb[0].mxu0 %v238
      %v277 = vpop.f32.mrb[0].mxu0
      %v278 = vadd.f32 0.0, %v277
      %v279 = vpop.f32.mrb[0].mxu0
      %v280 = vpop.f32.mrb[0].mxu0
      %v281 = vpop.f32.mrb[0].mxu0
      %282 = vdwg.mxu0
      %v283 = vsel %vm118, %v278, -1e+30
      %v284 = vsel %vm124, %v283, -inf
      %285 = vmax.xlane.f32.xlu0 %v284
      %v286 = vpop.xlane.xlu0 %285
      %v287 = vsub.f32 %v283, %v286
      %v288 = vmul.f32 %v287, 1.442695
      %v289 = vpow.pop %v288
      %v290 = vsel %vm124, %v289, 0.0
      %291 = vadd.xlane.f32.xlu0 %v290
      %v292 = vpop.xlane.xlu0 %291
      %v293 = vrcp.pop %v292
      %v294 = vmul.f32 %v289, %v293
      %v295 = vpack.c.bf16 %v294, %v294
      %296 = vrot.lane.b32.xlu0 %v121, 56
      %v297 = vpop.permute.xlu0 %296
      %v299 = vsel %vm124, %v295, 0
      %v302 = vsel %vm189, %v297, 0
      %304 = vmatprep.subr.bf16.mxu0 0
      %305 = vmatpush1.bf16.msra.mxu0 %v302
      %306 = vmatprep.subr.bf16.mxu0 0
      %307 = vmatpush1.bf16.msra.mxu0 0
      %308 = vmatprep.subr.bf16.mxu0 0
      %309 = vmatpush1.bf16.msra.mxu0 0
      %310 = vmatprep.subr.bf16.mxu0 0
      %311 = vmatpush1.bf16.msra.mxu0 0
      %312 = vmatprep.subr.bf16.mxu0 0
      %313 = vmatpush1.bf16.msra.mxu0 0
      %314 = vmatprep.subr.bf16.mxu0 0
      %315 = vmatpush1.bf16.msra.mxu0 0
      %316 = vmatprep.subr.bf16.mxu0 0
      %317 = vmatpush1.bf16.msra.mxu0 0
      %318 = vmatprep.subr.bf16.mxu0 0
      %319 = vmatpush1.bf16.msra.mxu0 0
      %320 = vmatprep.subr.bf16.mxu0 0
      %321 = vmatpush1.bf16.msra.mxu0 0
      %322 = vmatprep.subr.bf16.mxu0 0
      %323 = vmatpush1.bf16.msra.mxu0 0
      %324 = vmatprep.subr.bf16.mxu0 0
      %325 = vmatpush1.bf16.msra.mxu0 0
      %326 = vmatprep.subr.bf16.mxu0 0
      %327 = vmatpush1.bf16.msra.mxu0 0
      %328 = vmatprep.subr.bf16.mxu0 0
      %329 = vmatpush1.bf16.msra.mxu0 0
      %330 = vmatprep.subr.bf16.mxu0 0
      %331 = vmatpush1.bf16.msra.mxu0 0
      %332 = vmatprep.subr.bf16.mxu0 0
      %333 = vmatpush1.bf16.msra.mxu0 0
      %334 = vmatprep.subr.bf16.mxu0 0
      %335 = vmatpush1.bf16.msra.mxu0 0
      %336 = vmatprep.mubr.bf16.mxu0 0
      %337 = vmatmul.mubr.bf16.gmra.mrb[0].mxu0 %v299
      %v338 = vpop.f32.mrb[0].mxu0
      %v339 = vadd.f32 0.0, %v338
      %v340 = vpop.f32.mrb[0].mxu0
      %v341 = vpop.f32.mrb[0].mxu0
      %v342 = vpop.f32.mrb[0].mxu0
      %343 = vdwg.mxu0
      %344 = vrot.lane.b32.xlu0 %v121, 112
      %v345 = vpop.permute.xlu0 %344
      %346 = vrot.lane.b32.xlu0 %v121, 80
      %v347 = vpop.permute.xlu0 %346
      %v349 = vsel %vm124, %v345, 0
      %v352 = vsel %vm124, %v347, 0
      %354 = vmatprep.subr.bf16.mxu0 0
      %355 = vmatpush1.bf16.xpose.msra.mxu0 %v352
      %356 = vmatprep.subr.bf16.mxu0 0
      %357 = vmatpush1.bf16.xpose.msra.mxu0 0
      %358 = vmatprep.subr.bf16.mxu0 0
      %359 = vmatpush1.bf16.xpose.msra.mxu0 0
      %360 = vmatprep.subr.bf16.mxu0 0
      %361 = vmatpush1.bf16.xpose.msra.mxu0 0
      %362 = vmatprep.subr.bf16.mxu0 0
      %363 = vmatpush1.bf16.xpose.msra.mxu0 0
      %364 = vmatprep.subr.bf16.mxu0 0
      %365 = vmatpush1.bf16.xpose.msra.mxu0 0
      %366 = vmatprep.subr.bf16.mxu0 0
      %367 = vmatpush1.bf16.xpose.msra.mxu0 0
      %368 = vmatprep.subr.bf16.mxu0 0
      %369 = vmatpush1.bf16.xpose.msra.mxu0 0
      %370 = vmatprep.subr.bf16.mxu0 0
      %371 = vmatpush1.bf16.xpose.msra.mxu0 0
      %372 = vmatprep.subr.bf16.mxu0 0
      %373 = vmatpush1.bf16.xpose.msra.mxu0 0
      %374 = vmatprep.subr.bf16.mxu0 0
      %375 = vmatpush1.bf16.xpose.msra.mxu0 0
      %376 = vmatprep.subr.bf16.mxu0 0
      %377 = vmatpush1.bf16.xpose.msra.mxu0 0
      %378 = vmatprep.subr.bf16.mxu0 0
      %379 = vmatpush1.bf16.xpose.msra.mxu0 0
      %380 = vmatprep.subr.bf16.mxu0 0
      %381 = vmatpush1.bf16.xpose.msra.mxu0 0
      %382 = vmatprep.subr.bf16.mxu0 0
      %383 = vmatpush1.bf16.xpose.msra.mxu0 0
      %384 = vmatprep.subr.bf16.mxu0 0
      %385 = vmatpush1.bf16.xpose.msra.mxu0 0
      %386 = vmatprep.mubr.bf16.mxu0 0
      %387 = vmatmul.mubr.bf16.gmra.mrb[0].mxu0 %v349
      %v388 = vpop.f32.mrb[0].mxu0
      %v389 = vadd.f32 0.0, %v388
      %v390 = vpop.f32.mrb[0].mxu0
      %v391 = vpop.f32.mrb[0].mxu0
      %v392 = vpop.f32.mrb[0].mxu0
      %393 = vdwg.mxu0
      %v394 = vsel %vm118, %v389, -1e+30
      %v395 = vsel %vm124, %v394, -inf
      %396 = vmax.xlane.f32.xlu0 %v395
      %v397 = vpop.xlane.xlu0 %396
      %v398 = vsub.f32 %v394, %v397
      %v399 = vmul.f32 %v398, 1.442695
      %v400 = vpow.pop %v399
      %v401 = vsel %vm124, %v400, 0.0
      %402 = vadd.xlane.f32.xlu0 %v401
      %v403 = vpop.xlane.xlu0 %402
      %v404 = vrcp.pop %v403
      %v405 = vmul.f32 %v400, %v404
      %v406 = vpack.c.bf16 %v405, %v405
      %407 = vrot.lane.b32.xlu0 %v121, 48
      %v408 = vpop.permute.xlu0 %407
      %v410 = vsel %vm124, %v406, 0
      %v413 = vsel %vm189, %v408, 0
      %415 = vmatprep.subr.bf16.mxu0 0
      %416 = vmatpush1.bf16.msra.mxu0 %v413
      %417 = vmatprep.subr.bf16.mxu0 0
      %418 = vmatpush1.bf16.msra.mxu0 0
      %419 = vmatprep.subr.bf16.mxu0 0
      %420 = vmatpush1.bf16.msra.mxu0 0
      %421 = vmatprep.subr.bf16.mxu0 0
      %422 = vmatpush1.bf16.msra.mxu0 0
      %423 = vmatprep.subr.bf16.mxu0 0
      %424 = vmatpush1.bf16.msra.mxu0 0
      %425 = vmatprep.subr.bf16.mxu0 0
      %426 = vmatpush1.bf16.msra.mxu0 0
      %427 = vmatprep.subr.bf16.mxu0 0
      %428 = vmatpush1.bf16.msra.mxu0 0
      %429 = vmatprep.subr.bf16.mxu0 0
      %430 = vmatpush1.bf16.msra.mxu0 0
      %431 = vmatprep.subr.bf16.mxu0 0
      %432 = vmatpush1.bf16.msra.mxu0 0
      %433 = vmatprep.subr.bf16.mxu0 0
      %434 = vmatpush1.bf16.msra.mxu0 0
      %435 = vmatprep.subr.bf16.mxu0 0
      %436 = vmatpush1.bf16.msra.mxu0 0
      %437 = vmatprep.subr.bf16.mxu0 0
      %438 = vmatpush1.bf16.msra.mxu0 0
      %439 = vmatprep.subr.bf16.mxu0 0
      %440 = vmatpush1.bf16.msra.mxu0 0
      %441 = vmatprep.subr.bf16.mxu0 0
      %442 = vmatpush1.bf16.msra.mxu0 0
      %443 = vmatprep.subr.bf16.mxu0 0
      %444 = vmatpush1.bf16.msra.mxu0 0
      %445 = vmatprep.subr.bf16.mxu0 0
      %446 = vmatpush1.bf16.msra.mxu0 0
      %447 = vmatprep.mubr.bf16.mxu0 0
      %448 = vmatmul.mubr.bf16.gmra.mrb[0].mxu0 %v410
      %v449 = vpop.f32.mrb[0].mxu0
      %v450 = vadd.f32 0.0, %v449
      %v451 = vpop.f32.mrb[0].mxu0
      %v452 = vpop.f32.mrb[0].mxu0
      %v453 = vpop.f32.mrb[0].mxu0
      %454 = vdwg.mxu0
      %455 = vrot.lane.b32.xlu0 %v121, 104
      %v456 = vpop.permute.xlu0 %455
      %457 = vrot.lane.b32.xlu0 %v121, 72
      %v458 = vpop.permute.xlu0 %457
      %v460 = vsel %vm124, %v456, 0
      %v463 = vsel %vm124, %v458, 0
      %465 = vmatprep.subr.bf16.mxu0 0
      %466 = vmatpush1.bf16.xpose.msra.mxu0 %v463
      %467 = vmatprep.subr.bf16.mxu0 0
      %468 = vmatpush1.bf16.xpose.msra.mxu0 0
      %469 = vmatprep.subr.bf16.mxu0 0
      %470 = vmatpush1.bf16.xpose.msra.mxu0 0
      %471 = vmatprep.subr.bf16.mxu0 0
      %472 = vmatpush1.bf16.xpose.msra.mxu0 0
      %473 = vmatprep.subr.bf16.mxu0 0
      %474 = vmatpush1.bf16.xpose.msra.mxu0 0
      %475 = vmatprep.subr.bf16.mxu0 0
      %476 = vmatpush1.bf16.xpose.msra.mxu0 0
      %477 = vmatprep.subr.bf16.mxu0 0
      %478 = vmatpush1.bf16.xpose.msra.mxu0 0
      %479 = vmatprep.subr.bf16.mxu0 0
      %480 = vmatpush1.bf16.xpose.msra.mxu0 0
      %481 = vmatprep.subr.bf16.mxu0 0
      %482 = vmatpush1.bf16.xpose.msra.mxu0 0
      %483 = vmatprep.subr.bf16.mxu0 0
      %484 = vmatpush1.bf16.xpose.msra.mxu0 0
      %485 = vmatprep.subr.bf16.mxu0 0
      %486 = vmatpush1.bf16.xpose.msra.mxu0 0
      %487 = vmatprep.subr.bf16.mxu0 0
      %488 = vmatpush1.bf16.xpose.msra.mxu0 0
      %489 = vmatprep.subr.bf16.mxu0 0
      %490 = vmatpush1.bf16.xpose.msra.mxu0 0
      %491 = vmatprep.subr.bf16.mxu0 0
      %492 = vmatpush1.bf16.xpose.msra.mxu0 0
      %493 = vmatprep.subr.bf16.mxu0 0
      %494 = vmatpush1.bf16.xpose.msra.mxu0 0
      %495 = vmatprep.subr.bf16.mxu0 0
      %496 = vmatpush1.bf16.xpose.msra.mxu0 0
      %497 = vmatprep.mubr.bf16.mxu0 0
      %498 = vmatmul.mubr.bf16.gmra.mrb[0].mxu0 %v460
      %v499 = vpop.f32.mrb[0].mxu0
      %v500 = vadd.f32 0.0, %v499
      %v501 = vpop.f32.mrb[0].mxu0
      %v502 = vpop.f32.mrb[0].mxu0
      %v503 = vpop.f32.mrb[0].mxu0
      %504 = vdwg.mxu0
      %v505 = vsel %vm118, %v500, -1e+30
      %v506 = vsel %vm124, %v505, -inf
      %507 = vmax.xlane.f32.xlu0 %v506
      %v508 = vpop.xlane.xlu0 %507
      %v509 = vsub.f32 %v505, %v508
      %v510 = vmul.f32 %v509, 1.442695
      %v511 = vpow.pop %v510
      %v512 = vsel %vm124, %v511, 0.0
      %513 = vadd.xlane.f32.xlu0 %v512
      %v514 = vpop.xlane.xlu0 %513
      %v515 = vrcp.pop %v514
      %v516 = vmul.f32 %v511, %v515
      %v517 = vpack.c.bf16 %v516, %v516
      %518 = vrot.lane.b32.xlu0 %v121, 40
      %v519 = vpop.permute.xlu0 %518
      %v521 = vsel %vm124, %v517, 0
      %v524 = vsel %vm189, %v519, 0
      %526 = vmatprep.subr.bf16.mxu0 0
      %527 = vmatpush1.bf16.msra.mxu0 %v524
      %528 = vmatprep.subr.bf16.mxu0 0
      %529 = vmatpush1.bf16.msra.mxu0 0
      %530 = vmatprep.subr.bf16.mxu0 0
      %531 = vmatpush1.bf16.msra.mxu0 0
      %532 = vmatprep.subr.bf16.mxu0 0
      %533 = vmatpush1.bf16.msra.mxu0 0
      %534 = vmatprep.subr.bf16.mxu0 0
      %535 = vmatpush1.bf16.msra.mxu0 0
      %536 = vmatprep.subr.bf16.mxu0 0
      %537 = vmatpush1.bf16.msra.mxu0 0
      %538 = vmatprep.subr.bf16.mxu0 0
      %539 = vmatpush1.bf16.msra.mxu0 0
      %540 = vmatprep.subr.bf16.mxu0 0
      %541 = vmatpush1.bf16.msra.mxu0 0
      %542 = vmatprep.subr.bf16.mxu0 0
      %543 = vmatpush1.bf16.msra.mxu0 0
      %544 = vmatprep.subr.bf16.mxu0 0
      %545 = vmatpush1.bf16.msra.mxu0 0
      %546 = vmatprep.subr.bf16.mxu0 0
      %547 = vmatpush1.bf16.msra.mxu0 0
      %548 = vmatprep.subr.bf16.mxu0 0
      %549 = vmatpush1.bf16.msra.mxu0 0
      %550 = vmatprep.subr.bf16.mxu0 0
      %551 = vmatpush1.bf16.msra.mxu0 0
      %552 = vmatprep.subr.bf16.mxu0 0
      %553 = vmatpush1.bf16.msra.mxu0 0
      %554 = vmatprep.subr.bf16.mxu0 0
      %555 = vmatpush1.bf16.msra.mxu0 0
      %556 = vmatprep.subr.bf16.mxu0 0
      %557 = vmatpush1.bf16.msra.mxu0 0
      %558 = vmatprep.mubr.bf16.mxu0 0
      %559 = vmatmul.mubr.bf16.gmra.mrb[0].mxu0 %v521
      %v560 = vpop.f32.mrb[0].mxu0
      %v561 = vadd.f32 0.0, %v560
      %v562 = vpop.f32.mrb[0].mxu0
      %v563 = vpop.f32.mrb[0].mxu0
      %v564 = vpop.f32.mrb[0].mxu0
      %565 = vdwg.mxu0
      %567 = vrot.lane.b32.xlu0 %v339, 8
      %v568 = vpop.permute.xlu0 %567
      %571 = vrot.lane.b32.xlu0 %v450, 16
      %v572 = vpop.permute.xlu0 %571
      %575 = vrot.lane.b32.xlu0 %v561, 24
      %v576 = vpop.permute.xlu0 %575
      %v578 = vsel %vm124, %v228, %v568
      %vm579 = vcmask 130048
      %v580 = vsel %vm579, %v578, %v572
      %vm581 = vcmask 195584
      %v582 = vsel %vm581, %v580, %v576
      %v583 = vpack.c.bf16 %v582, %v582
      %vm584 = vcmask 257024
      %585 = vst.msk [vmem:[%s111] sm:$0xf] %vm584, %v583
      %p586 = scmp.lt.s32.totalorder %s12, 1
      %s587 = scalar_select %p586, %s12, 1
      %s588 = smul.addr %s587, 4
      %s589 = scalar_lea.vmem %s1, %s588
      // Predicated region
      $region25: #{clip_text_forward.9} parent=23 // pred_check
        %p590 = pneg %p56
      $region26: #{clip_text_forward.9} parent=23 // pred_check_branch
        %592 = sbr.rel (%p590) target = $region28
      $region27: #{clip_text_forward.9} parent=23 // pred_region
        _
      $region28: #{clip_text_forward.9} parent=23 // pred_fallthru
        _
    $region24: #{clip_text_forward.9} parent=5 // pred_fallthru
      _
    %p593 = scmp.le.s32.totalorder 2, %s7
    // Predicated region
    $region29: #{clip_text_forward.9} parent=5 // pred_check
      %p594 = pneg %p593
    $region30: #{clip_text_forward.9} parent=5 // pred_check_branch
      %596 = sbr.rel (%p594) target = $region32
    $region31: #{clip_text_forward.9} parent=5 // pred_region
      %s597 = ssub.s32 %s7, 2
      // Predicated region
      $region33: #{clip_text_forward.9} parent=31 // pred_check
        %p598 = pneg %p62
      $region34: #{clip_text_forward.9} parent=31 // pred_check_branch
        %600 = sbr.rel (%p598) target = $region36
      $region35: #{clip_text_forward.9} parent=31 // pred_region
        %p601 = scmp.lt.s32.totalorder %s13, 1
        %s602 = scalar_select %p601, %s13, 1
        %s603 = smul.addr %s602, 4
        %s604 = scalar_lea.vmem %s1, %s603
      $region36: #{clip_text_forward.9} parent=31 // pred_fallthru
        _
    $region32: #{clip_text_forward.9} parent=5 // pred_fallthru
      _
  $region6: #{clip_text_forward.9} parent=0 // loop_footer
    %s11 = sadd.s32 1, %s7
  $region7: #{clip_text_forward.9} parent=0 // loop_footer_branch
    %6 = sbr.rel target = $region3
  $region8: #{clip_text_forward.9} parent=0 // loop_exit
    _

// kernel: clip_text_forward.10
$region0: #{clip_text_forward.10}
  #allocation0 [shape = 'u32[]', space=smem, size = 0x4, offset = 0x4, fixed_abs, tag = 'smem constant byte address 0x4 - core index']
  #allocation1 [shape = 'u32[144,128]{1,0:T(1,128)}', space=vmem, size = 0x12000, scoped, tag = 'internal scratch']
  %s0 = inlined_call_operand.vmem [shape: bf16[16,32], index: 0, kind: input, shape index: {}]
  %s1 = inlined_call_operand.vmem [shape: f32[16,32], index: 1, kind: input, shape index: {}]
  %s2 = inlined_call_operand.vmem [shape: bf16[32,32], index: 2, kind: input, shape index: {}]
  %s3 = inlined_call_operand.vmem [shape: f32[1,32], index: 3, kind: input, shape index: {}]
  %s4 = inlined_call_operand.vmem [shape: f32[1,32], index: 4, kind: input, shape index: {}]
  %s5 = inlined_call_operand.vmem [shape: f32[1,32], index: 5, kind: input, shape index: {}]
  %s6 = inlined_call_operand.vmem [shape: bf16[32,128], index: 6, kind: input, shape index: {}]
  %s7 = inlined_call_operand.vmem [shape: f32[1,128], index: 7, kind: input, shape index: {}]
  %s8 = inlined_call_operand.vmem [shape: bf16[128,32], index: 8, kind: input, shape index: {}]
  %s9 = inlined_call_operand.vmem [shape: f32[1,32], index: 9, kind: input, shape index: {}]
  %s10 = inlined_call_operand.vmem [shape: f32[16,32], index: 10, kind: output, shape index: {}]
  %s11 = sld [smem:[#allocation0]]
  $region50: #{clip_text_forward.10} parent=0
    _
  %s13 = ssub.s32 1, %s11
  %s14 = scalar_select 0, %s13, %s11
  // Predicated region
  $region2: #{clip_text_forward.10} parent=0 // pred_check
    _
  $region3: #{clip_text_forward.10} parent=0 // pred_check_branch
    %16 = sbr.rel (0) target = $region5
  $region4: #{clip_text_forward.10} parent=0 // pred_region
    _
  $region5: #{clip_text_forward.10} parent=0 // pred_fallthru
    _
  // Predicated region
  $region6: #{clip_text_forward.10} parent=0 // pred_check
    _
  $region7: #{clip_text_forward.10} parent=0 // pred_check_branch
    %18 = sbr.rel (0) target = $region9
  $region8: #{clip_text_forward.10} parent=0 // pred_region
    _
  $region9: #{clip_text_forward.10} parent=0 // pred_fallthru
    _
  // Predicated region
  $region10: #{clip_text_forward.10} parent=0 // pred_check
    _
  $region11: #{clip_text_forward.10} parent=0 // pred_check_branch
    %20 = sbr.rel (0) target = $region13
  $region12: #{clip_text_forward.10} parent=0 // pred_region
    _
  $region13: #{clip_text_forward.10} parent=0 // pred_fallthru
    _
  // Predicated region
  $region14: #{clip_text_forward.10} parent=0 // pred_check
    _
  $region15: #{clip_text_forward.10} parent=0 // pred_check_branch
    %22 = sbr.rel (0) target = $region17
  $region16: #{clip_text_forward.10} parent=0 // pred_region
    _
  $region17: #{clip_text_forward.10} parent=0 // pred_fallthru
    _
  // Predicated region
  $region18: #{clip_text_forward.10} parent=0 // pred_check
    _
  $region19: #{clip_text_forward.10} parent=0 // pred_check_branch
    %24 = sbr.rel (0) target = $region21
  $region20: #{clip_text_forward.10} parent=0 // pred_region
    _
  $region21: #{clip_text_forward.10} parent=0 // pred_fallthru
    _
  // Predicated region
  $region22: #{clip_text_forward.10} parent=0 // pred_check
    _
  $region23: #{clip_text_forward.10} parent=0 // pred_check_branch
    %26 = sbr.rel (0) target = $region25
  $region24: #{clip_text_forward.10} parent=0 // pred_region
    _
  $region25: #{clip_text_forward.10} parent=0 // pred_fallthru
    _
  // Predicated region
  $region26: #{clip_text_forward.10} parent=0 // pred_check
    _
  $region27: #{clip_text_forward.10} parent=0 // pred_check_branch
    %28 = sbr.rel (0) target = $region29
  $region28: #{clip_text_forward.10} parent=0 // pred_region
    _
  $region29: #{clip_text_forward.10} parent=0 // pred_fallthru
    _
  // Predicated region
  $region30: #{clip_text_forward.10} parent=0 // pred_check
    _
  $region31: #{clip_text_forward.10} parent=0 // pred_check_branch
    %30 = sbr.rel (0) target = $region33
  $region32: #{clip_text_forward.10} parent=0 // pred_region
    _
  $region33: #{clip_text_forward.10} parent=0 // pred_fallthru
    _
  // Predicated region
  $region34: #{clip_text_forward.10} parent=0 // pred_check
    _
  $region35: #{clip_text_forward.10} parent=0 // pred_check_branch
    %32 = sbr.rel (0) target = $region37
  $region36: #{clip_text_forward.10} parent=0 // pred_region
    _
  $region37: #{clip_text_forward.10} parent=0 // pred_fallthru
    _
  // Predicated region
  $region38: #{clip_text_forward.10} parent=0 // pred_check
    _
  $region39: #{clip_text_forward.10} parent=0 // pred_check_branch
    %34 = sbr.rel (0) target = $region41
  $region40: #{clip_text_forward.10} parent=0 // pred_region
    _
  $region41: #{clip_text_forward.10} parent=0 // pred_fallthru
    _
  %v36 = vld [vmem:[%s0] sm:$0xf]
  %v37 = vld [vmem:[%s0 + $0x4] sm:$0xf]
  %v38 = vld [vmem:[%s2] sm:$0xf]
  %v39 = vld [vmem:[%s2 + $0x4] sm:$0xf]
  %v40 = vld [vmem:[%s2 + $0x8] sm:$0xf]
  %v41 = vld [vmem:[%s2 + $0xc] sm:$0xf]
  %v42 = vld [vmem:[%s3] sm:$0x1]
  %v44 = vlaneseq
  %v45 = vshrl.u32 %v44, 7
  %v46 = vsub.s32 0, %v45
  %v47 = vrot.slane %v42, %v46
  %v51 = vunpack.c.l.b16 %v36
  %v52 = vunpack.c.l.b16 %v37
  %v53 = vpack.c.b16 %v52, %v51
  %v58 = vunpack.c.l.b16 %v38
  %v59 = vunpack.c.l.b16 %v39
  %v60 = vunpack.c.l.b16 %v40
  %v61 = vunpack.c.l.b16 %v41
  %v62 = vpack.c.b16 %v59, %v58
  %v63 = vpack.c.b16 %v61, %v60
  %vm66 = vcmask 261120
  %v68 = vsel %vm66, %v53, 0
  %70 = vmatprep.subr.bf16.mxu0 0
  %71 = vmatpush1.bf16.msra.mxu0 %v62
  %72 = vmatprep.subr.bf16.mxu0 0
  %73 = vmatpush1.bf16.msra.mxu0 %v63
  %74 = vmatprep.subr.bf16.mxu0 0
  %75 = vmatpush1.bf16.msra.mxu0 0
  %76 = vmatprep.subr.bf16.mxu0 0
  %77 = vmatpush1.bf16.msra.mxu0 0
  %78 = vmatprep.subr.bf16.mxu0 0
  %79 = vmatpush1.bf16.msra.mxu0 0
  %80 = vmatprep.subr.bf16.mxu0 0
  %81 = vmatpush1.bf16.msra.mxu0 0
  %82 = vmatprep.subr.bf16.mxu0 0
  %83 = vmatpush1.bf16.msra.mxu0 0
  %84 = vmatprep.subr.bf16.mxu0 0
  %85 = vmatpush1.bf16.msra.mxu0 0
  %86 = vmatprep.subr.bf16.mxu0 0
  %87 = vmatpush1.bf16.msra.mxu0 0
  %88 = vmatprep.subr.bf16.mxu0 0
  %89 = vmatpush1.bf16.msra.mxu0 0
  %90 = vmatprep.subr.bf16.mxu0 0
  %91 = vmatpush1.bf16.msra.mxu0 0
  %92 = vmatprep.subr.bf16.mxu0 0
  %93 = vmatpush1.bf16.msra.mxu0 0
  %94 = vmatprep.subr.bf16.mxu0 0
  %95 = vmatpush1.bf16.msra.mxu0 0
  %96 = vmatprep.subr.bf16.mxu0 0
  %97 = vmatpush1.bf16.msra.mxu0 0
  %98 = vmatprep.subr.bf16.mxu0 0
  %99 = vmatpush1.bf16.msra.mxu0 0
  %100 = vmatprep.subr.bf16.mxu0 0
  %101 = vmatpush1.bf16.msra.mxu0 0
  %102 = vmatprep.mubr.bf16.mxu0 0
  %103 = vmatmul.mubr.bf16.gmra.mrb[0].mxu0 %v68
  %v104 = vpop.f32.mrb[0].mxu0
  %v105 = vadd.f32 %v47, %v104
  %v106 = vpop.f32.mrb[0].mxu0
  %v107 = vpop.f32.mrb[0].mxu0
  %v108 = vadd.f32 %v47, %v107
  %v109 = vpop.f32.mrb[0].mxu0
  %110 = vdwg.mxu0
  %v111 = vld [vmem:[%s1] sm:$0xff]
  %v112 = vld [vmem:[%s1 + $0x8] sm:$0xff]
  %v113 = vadd.f32 %v111, %v105
  %v114 = vadd.f32 %v112, %v108
  %v115 = vld [vmem:[%s4] sm:$0x1]
  %v116 = vld [vmem:[%s5] sm:$0x1]
  %v117 = vsel %vm66, %v113, 0.0
  %118 = vadd.xlane.f32.xlu0 %v117
  %v119 = vpop.xlane.xlu0 %118
  %v120 = vsel %vm66, %v114, 0.0
  %121 = vadd.xlane.f32.xlu0 %v120
  %v122 = vpop.xlane.xlu0 %121
  %v123 = vrcp.pop 32.0
  %v124 = vmul.f32 %v119, %v123
  %v125 = vmul.f32 %v122, %v123
  %v126 = vsub.f32 %v113, %v124
  %v127 = vsub.f32 %v114, %v125
  %v128 = vmul.f32 %v126, %v126
  %v129 = vmul.f32 %v127, %v127
  %v130 = vsel %vm66, %v128, 0.0
  %131 = vadd.xlane.f32.xlu0 %v130
  %v132 = vpop.xlane.xlu0 %131
  %v133 = vsel %vm66, %v129, 0.0
  %134 = vadd.xlane.f32.xlu0 %v133
  %v135 = vpop.xlane.xlu0 %134
  %v136 = vmul.f32 %v132, %v123
  %v137 = vmul.f32 %v135, %v123
  %v138 = vadd.f32 %v136, 1e-05
  %v139 = vadd.f32 %v137, 1e-05
  %v140 = vrsqrt.pop %v138
  %v141 = vrsqrt.pop %v139
  %v142 = vmul.f32 %v126, %v140
  %v143 = vmul.f32 %v127, %v141
  %v145 = vlaneseq
  %v146 = vshrl.u32 %v145, 7
  %v147 = vsub.s32 0, %v146
  %v148 = vrot.slane %v115, %v147
  %v150 = vmul.f32 %v142, %v148
  %v151 = vmul.f32 %v143, %v148
  %v153 = vlaneseq
  %v154 = vshrl.u32 %v153, 7
  %v155 = vsub.s32 0, %v154
  %v156 = vrot.slane %v116, %v155
  %v158 = vadd.f32 %v150, %v156
  %v159 = vadd.f32 %v151, %v156
  %v160 = vpack.c.bf16 %v159, %v158
  %v161 = vld [vmem:[%s6] sm:$0xf]
  %v162 = vld [vmem:[%s6 + $0x4] sm:$0xf]
  %v163 = vld [vmem:[%s6 + $0x8] sm:$0xf]
  %v164 = vld [vmem:[%s6 + $0xc] sm:$0xf]
  %v165 = vld [vmem:[%s7] sm:$0x1]
  %v167 = vlaneseq
  %v168 = vshrl.u32 %v167, 7
  %v169 = vsub.s32 0, %v168
  %v170 = vrot.slane %v165, %v169
  %v176 = vunpack.c.l.b16 %v161
  %v177 = vunpack.c.l.b16 %v162
  %v178 = vunpack.c.l.b16 %v163
  %v179 = vunpack.c.l.b16 %v164
  %v180 = vpack.c.b16 %v177, %v176
  %v181 = vpack.c.b16 %v179, %v178
  %v185 = vsel %vm66, %v160, 0
  %187 = vmatprep.subr.bf16.mxu0 0
  %188 = vmatpush1.bf16.msra.mxu0 %v180
  %189 = vmatprep.subr.bf16.mxu0 0
  %190 = vmatpush1.bf16.msra.mxu0 %v181
  %191 = vmatprep.subr.bf16.mxu0 0
  %192 = vmatpush1.bf16.msra.mxu0 0
  %193 = vmatprep.subr.bf16.mxu0 0
  %194 = vmatpush1.bf16.msra.mxu0 0
  %195 = vmatprep.subr.bf16.mxu0 0
  %196 = vmatpush1.bf16.msra.mxu0 0
  %197 = vmatprep.subr.bf16.mxu0 0
  %198 = vmatpush1.bf16.msra.mxu0 0
  %199 = vmatprep.subr.bf16.mxu0 0
  %200 = vmatpush1.bf16.msra.mxu0 0
  %201 = vmatprep.subr.bf16.mxu0 0
  %202 = vmatpush1.bf16.msra.mxu0 0
  %203 = vmatprep.subr.bf16.mxu0 0
  %204 = vmatpush1.bf16.msra.mxu0 0
  %205 = vmatprep.subr.bf16.mxu0 0
  %206 = vmatpush1.bf16.msra.mxu0 0
  %207 = vmatprep.subr.bf16.mxu0 0
  %208 = vmatpush1.bf16.msra.mxu0 0
  %209 = vmatprep.subr.bf16.mxu0 0
  %210 = vmatpush1.bf16.msra.mxu0 0
  %211 = vmatprep.subr.bf16.mxu0 0
  %212 = vmatpush1.bf16.msra.mxu0 0
  %213 = vmatprep.subr.bf16.mxu0 0
  %214 = vmatpush1.bf16.msra.mxu0 0
  %215 = vmatprep.subr.bf16.mxu0 0
  %216 = vmatpush1.bf16.msra.mxu0 0
  %217 = vmatprep.subr.bf16.mxu0 0
  %218 = vmatpush1.bf16.msra.mxu0 0
  %219 = vmatprep.mubr.bf16.mxu0 0
  %220 = vmatmul.mubr.bf16.gmra.mrb[0].mxu0 %v185
  %v221 = vpop.f32.mrb[0].mxu0
  %v222 = vadd.f32 %v170, %v221
  %v223 = vpop.f32.mrb[0].mxu0
  %v224 = vpop.f32.mrb[0].mxu0
  %v225 = vadd.f32 %v170, %v224
  %v226 = vpop.f32.mrb[0].mxu0
  %227 = vdwg.mxu0
  %v228 = vmul.f32 %v222, 1.702
  %v229 = vmul.f32 %v225, 1.702
  %v230 = vxor.u32 %v228, 2147483648
  %v231 = vxor.u32 %v229, 2147483648
  %v232 = vmul.f32 %v230, 1.442695
  %v233 = vpow.pop %v232
  %v234 = vmul.f32 %v231, 1.442695
  %v235 = vpow.pop %v234
  %v236 = vadd.f32 %v233, 1.0
  %v237 = vadd.f32 %v235, 1.0
  %v238 = vrcp.pop %v236
  %v239 = vmul.f32 1.0, %v238
  %v240 = vrcp.pop %v237
  %v241 = vmul.f32 1.0, %v240
  %v242 = vmul.f32 %v222, %v239
  %v243 = vmul.f32 %v225, %v241
  %v244 = vpack.c.bf16 %v243, %v242
  %v245 = vld [vmem:[%s8] sm:$0xf]
  %v246 = vld [vmem:[%s8 + $0x4] sm:$0xf]
  %v247 = vld [vmem:[%s8 + $0x8] sm:$0xf]
  %v248 = vld [vmem:[%s8 + $0xc] sm:$0xf]
  %v249 = vld [vmem:[%s8 + $0x10] sm:$0xf]
  %v250 = vld [vmem:[%s8 + $0x14] sm:$0xf]
  %v251 = vld [vmem:[%s8 + $0x18] sm:$0xf]
  %v252 = vld [vmem:[%s8 + $0x1c] sm:$0xf]
  %v253 = vld [vmem:[%s8 + $0x20] sm:$0xf]
  %v254 = vld [vmem:[%s8 + $0x24] sm:$0xf]
  %v255 = vld [vmem:[%s8 + $0x28] sm:$0xf]
  %v256 = vld [vmem:[%s8 + $0x2c] sm:$0xf]
  %v257 = vld [vmem:[%s8 + $0x30] sm:$0xf]
  %v258 = vld [vmem:[%s8 + $0x34] sm:$0xf]
  %v259 = vld [vmem:[%s8 + $0x38] sm:$0xf]
  %v260 = vld [vmem:[%s8 + $0x3c] sm:$0xf]
  %v261 = vld [vmem:[%s9] sm:$0x1]
  %v263 = vlaneseq
  %v264 = vshrl.u32 %v263, 7
  %v265 = vsub.s32 0, %v264
  %v266 = vrot.slane %v261, %v265
  %v284 = vunpack.c.l.b16 %v245
  %v285 = vunpack.c.l.b16 %v246
  %v286 = vunpack.c.l.b16 %v247
  %v287 = vunpack.c.l.b16 %v248
  %v288 = vunpack.c.l.b16 %v249
  %v289 = vunpack.c.l.b16 %v250
  %v290 = vunpack.c.l.b16 %v251
  %v291 = vunpack.c.l.b16 %v252
  %v292 = vunpack.c.l.b16 %v253
  %v293 = vunpack.c.l.b16 %v254
  %v294 = vunpack.c.l.b16 %v255
  %v295 = vunpack.c.l.b16 %v256
  %v296 = vunpack.c.l.b16 %v257
  %v297 = vunpack.c.l.b16 %v258
  %v298 = vunpack.c.l.b16 %v259
  %v299 = vunpack.c.l.b16 %v260
  %v300 = vpack.c.b16 %v285, %v284
  %v301 = vpack.c.b16 %v287, %v286
  %v302 = vpack.c.b16 %v289, %v288
  %v303 = vpack.c.b16 %v291, %v290
  %v304 = vpack.c.b16 %v293, %v292
  %v305 = vpack.c.b16 %v295, %v294
  %v306 = vpack.c.b16 %v297, %v296
  %v307 = vpack.c.b16 %v299, %v298
  %316 = vmatprep.subr.bf16.mxu0 0
  %317 = vmatpush1.bf16.msra.mxu0 %v300
  %318 = vmatprep.subr.bf16.mxu0 0
  %319 = vmatpush1.bf16.msra.mxu0 %v301
  %320 = vmatprep.subr.bf16.mxu0 0
  %321 = vmatpush1.bf16.msra.mxu0 %v302
  %322 = vmatprep.subr.bf16.mxu0 0
  %323 = vmatpush1.bf16.msra.mxu0 %v303
  %324 = vmatprep.subr.bf16.mxu0 0
  %325 = vmatpush1.bf16.msra.mxu0 %v304
  %326 = vmatprep.subr.bf16.mxu0 0
  %327 = vmatpush1.bf16.msra.mxu0 %v305
  %328 = vmatprep.subr.bf16.mxu0 0
  %329 = vmatpush1.bf16.msra.mxu0 %v306
  %330 = vmatprep.subr.bf16.mxu0 0
  %331 = vmatpush1.bf16.msra.mxu0 %v307
  %332 = vmatprep.subr.bf16.mxu0 0
  %333 = vmatpush1.bf16.msra.mxu0 0
  %334 = vmatprep.subr.bf16.mxu0 0
  %335 = vmatpush1.bf16.msra.mxu0 0
  %336 = vmatprep.subr.bf16.mxu0 0
  %337 = vmatpush1.bf16.msra.mxu0 0
  %338 = vmatprep.subr.bf16.mxu0 0
  %339 = vmatpush1.bf16.msra.mxu0 0
  %340 = vmatprep.subr.bf16.mxu0 0
  %341 = vmatpush1.bf16.msra.mxu0 0
  %342 = vmatprep.subr.bf16.mxu0 0
  %343 = vmatpush1.bf16.msra.mxu0 0
  %344 = vmatprep.subr.bf16.mxu0 0
  %345 = vmatpush1.bf16.msra.mxu0 0
  %346 = vmatprep.subr.bf16.mxu0 0
  %347 = vmatpush1.bf16.msra.mxu0 0
  %348 = vmatprep.mubr.bf16.mxu0 0
  %349 = vmatmul.mubr.bf16.gmra.mrb[0].mxu0 %v244
  %v350 = vpop.f32.mrb[0].mxu0
  %v351 = vadd.f32 %v266, %v350
  %v352 = vpop.f32.mrb[0].mxu0
  %v353 = vpop.f32.mrb[0].mxu0
  %v354 = vadd.f32 %v266, %v353
  %v355 = vpop.f32.mrb[0].mxu0
  %356 = vdwg.mxu0
  %v357 = vadd.f32 %v113, %v351
  %v358 = vadd.f32 %v114, %v354
  %359 = vst.msk [vmem:[%s10] sm:$0xff] %vm66, %v357
  %360 = vst.msk [vmem:[%s10 + $0x8] sm:$0xff] %vm66, %v358
  // Predicated region
  $region42: #{clip_text_forward.10} parent=0 // pred_check
    _
  $region43: #{clip_text_forward.10} parent=0 // pred_check_branch
    %362 = sbr.rel (0) target = $region45
  $region44: #{clip_text_forward.10} parent=0 // pred_region
    _
  $region45: #{clip_text_forward.10} parent=0 // pred_fallthru
    _
  // Predicated region
  $region46: #{clip_text_forward.10} parent=0 // pred_check
    _
  $region47: #{clip_text_forward.10} parent=0 // pred_check_branch
    %364 = sbr.rel (0) target = $region49
  $region48: #{clip_text_forward.10} parent=0 // pred_region
    _
  $region49: #{clip_text_forward.10} parent=0 // pred_fallthru
    _

// kernel: clip_text_forward.15
$region0: #{clip_text_forward.15}
  #allocation0 [shape = 'u32[]', space=smem, size = 0x4, offset = 0x4, fixed_abs, tag = 'smem constant byte address 0x4 - core index']
  #allocation1 [shape = 'u32[144,128]{1,0:T(1,128)}', space=vmem, size = 0x12000, scoped, tag = 'internal scratch']
  %s0 = inlined_call_operand.vmem [shape: bf16[2,32], index: 0, kind: input, shape index: {}]
  %s1 = inlined_call_operand.vmem [shape: bf16[32,16], index: 1, kind: input, shape index: {}]
  %s2 = inlined_call_operand.vmem [shape: f32[1,16], index: 2, kind: input, shape index: {}]
  %s3 = inlined_call_operand.hbm [shape: f32[2,16], index: 3, kind: output, shape index: {}]
  %s4 = sld [smem:[#allocation0]]
  $region22: #{clip_text_forward.15} parent=0
    _
  %s6 = ssub.s32 1, %s4
  %s7 = scalar_select 0, %s6, %s4
  $region1: #{clip_text_forward.15} parent=0
    #allocation2 [shape = 'u8[1024]{0}', space=vmem, size = 0x400, scoped, tag = 'output window, operand 0, single buffered']
    #allocation3 [shape = 's32[1]{0}', space=sflag, size = 0x4, scoped, tag = 'scoped memory for clip_text_forward.15']
    %8 = vsyncpa [#allocation3], 0
    // Predicated region
    $region2: #{clip_text_forward.15} parent=1 // pred_check
      _
    $region3: #{clip_text_forward.15} parent=1 // pred_check_branch
      %10 = sbr.rel (0) target = $region5
    $region4: #{clip_text_forward.15} parent=1 // pred_region
      _
    $region5: #{clip_text_forward.15} parent=1 // pred_fallthru
      _
    // Predicated region
    $region6: #{clip_text_forward.15} parent=1 // pred_check
      _
    $region7: #{clip_text_forward.15} parent=1 // pred_check_branch
      %12 = sbr.rel (0) target = $region9
    $region8: #{clip_text_forward.15} parent=1 // pred_region
      _
    $region9: #{clip_text_forward.15} parent=1 // pred_fallthru
      _
    // Predicated region
    $region10: #{clip_text_forward.15} parent=1 // pred_check
      _
    $region11: #{clip_text_forward.15} parent=1 // pred_check_branch
      %14 = sbr.rel (0) target = $region13
    $region12: #{clip_text_forward.15} parent=1 // pred_region
      _
    $region13: #{clip_text_forward.15} parent=1 // pred_fallthru
      _
    %v16 = vld [vmem:[%s0] sm:$0x1]
    %v17 = vld [vmem:[%s1] sm:$0xf]
    %v18 = vld [vmem:[%s1 + $0x4] sm:$0xf]
    %v19 = vld [vmem:[%s1 + $0x8] sm:$0xf]
    %v20 = vld [vmem:[%s1 + $0xc] sm:$0xf]
    %v21 = vld [vmem:[%s2] sm:$0x1]
    %v23 = vlaneseq
    %v24 = vshrl.u32 %v23, 7
    %v25 = vsub.s32 0, %v24
    %v26 = vrot.slane %v21, %v25
    %v32 = vunpack.c.l.b16 %v17
    %v33 = vunpack.c.l.b16 %v18
    %v34 = vunpack.c.l.b16 %v19
    %v35 = vunpack.c.l.b16 %v20
    %v36 = vpack.c.b16 %v33, %v32
    %v37 = vpack.c.b16 %v35, %v34
    %vm40 = vcmask 261120
    %v42 = vsel %vm40, %v16, 0
    %44 = vmatprep.subr.bf16.mxu0 0
    %45 = vmatpush1.bf16.msra.mxu0 %v36
    %46 = vmatprep.subr.bf16.mxu0 0
    %47 = vmatpush1.bf16.msra.mxu0 %v37
    %48 = vmatprep.subr.bf16.mxu0 0
    %49 = vmatpush1.bf16.msra.mxu0 0
    %50 = vmatprep.subr.bf16.mxu0 0
    %51 = vmatpush1.bf16.msra.mxu0 0
    %52 = vmatprep.subr.bf16.mxu0 0
    %53 = vmatpush1.bf16.msra.mxu0 0
    %54 = vmatprep.subr.bf16.mxu0 0
    %55 = vmatpush1.bf16.msra.mxu0 0
    %56 = vmatprep.subr.bf16.mxu0 0
    %57 = vmatpush1.bf16.msra.mxu0 0
    %58 = vmatprep.subr.bf16.mxu0 0
    %59 = vmatpush1.bf16.msra.mxu0 0
    %60 = vmatprep.subr.bf16.mxu0 0
    %61 = vmatpush1.bf16.msra.mxu0 0
    %62 = vmatprep.subr.bf16.mxu0 0
    %63 = vmatpush1.bf16.msra.mxu0 0
    %64 = vmatprep.subr.bf16.mxu0 0
    %65 = vmatpush1.bf16.msra.mxu0 0
    %66 = vmatprep.subr.bf16.mxu0 0
    %67 = vmatpush1.bf16.msra.mxu0 0
    %68 = vmatprep.subr.bf16.mxu0 0
    %69 = vmatpush1.bf16.msra.mxu0 0
    %70 = vmatprep.subr.bf16.mxu0 0
    %71 = vmatpush1.bf16.msra.mxu0 0
    %72 = vmatprep.subr.bf16.mxu0 0
    %73 = vmatpush1.bf16.msra.mxu0 0
    %74 = vmatprep.subr.bf16.mxu0 0
    %75 = vmatpush1.bf16.msra.mxu0 0
    %76 = vmatprep.mubr.bf16.mxu0 0
    %77 = vmatmul.mubr.bf16.gmra.mrb[0].mxu0 %v42
    %v78 = vpop.f32.mrb[0].mxu0
    %v79 = vadd.f32 %v26, %v78
    %v80 = vpop.f32.mrb[0].mxu0
    %v81 = vpop.f32.mrb[0].mxu0
    %v82 = vpop.f32.mrb[0].mxu0
    %83 = vdwg.mxu0
    %vm84 = vcmask 123904
    %85 = vst.msk [vmem:[#allocation2] sm:$0x3] %vm84, %v79
    // Predicated region
    $region14: #{clip_text_forward.15} parent=1 // pred_check
      _
    $region15: #{clip_text_forward.15} parent=1 // pred_check_branch
      %87 = sbr.rel (0) target = $region17
    $region16: #{clip_text_forward.15} parent=1 // pred_region
      %s89 = ssub.s32 32, 32
      %90 = vsyncadd [#allocation3], %s89
      %s92 = sshll.u32 [#allocation2], 4
      %s93 = int_to_ptr.vmem [resolvable:$true] %s92
      %95 = dma.vmem_to_hbm [thread:$0]  %s93, 32, %s3, [#allocation3]
    $region17: #{clip_text_forward.15} parent=1 // pred_fallthru
      _
    // Predicated region
    $region18: #{clip_text_forward.15} parent=1 // pred_check
      _
    $region19: #{clip_text_forward.15} parent=1 // pred_check_branch
      %97 = sbr.rel (0) target = $region21
    $region20: #{clip_text_forward.15} parent=1 // pred_region
      %98 = dma.done [#allocation3], 32
    $region21: #{clip_text_forward.15} parent=1 // pred_fallthru
      _
    %99 = vsyncpa [#allocation3], 1

</llo_original>
